<compile_context>
chip_gen: v7x
topology: tpu7x:2x2x1
jax: 0.10.0
libtpu: 0.0.40
codegen_flags: <defaults>
</compile_context>

<pallas_src>
import jax
import jax.numpy as jnp
from jax.experimental import pallas as pl
from jax.experimental.pallas import tpu as pltpu

EPS = 1e-5


# ------------------------------ Pallas kernels ------------------------------ #

def _act_conv3x3_stats_kernel(x_ref, sc_ref, sh_ref, a_ref, s_ref, wm_ref, b_ref,
                              y_ref, ssum_ref, ssq_ref):
    """(scale/shift + PReLU) -> 3x3 conv (block matmuls) -> bias -> BN partial stats.

    x_ref  : (1, H, WC)  compute dtype  activations, lane index = w*C + c
    sc/sh/a/b_ref : (1, WC) f32         lane-tiled per-channel vectors
    s_ref  : (3, H, H)   compute dtype  0/1 row-shift matrices (diag offset dy-1)
    wm_ref : (3, WC, WC) compute dtype  block conv weights (dx shift + W pad folded in)
    y_ref  : (1, H, WC)  compute dtype  conv output (pre-BN)
    ssum_ref/ssq_ref : (1, 1, WC) f32   per-lane sum / sum-of-squares of conv output
    """
    # Pre-activation (BN-apply + PReLU of the *previous* layer; identity for layer 1).
    t = x_ref[0].astype(jnp.float32) * sc_ref[...] + sh_ref[...]
    t = jnp.where(t >= 0, t, a_ref[...] * t)
    tc = t.astype(y_ref.dtype)                                  # matmul operand dtype

    # 3x3 conv: dy = 1 needs no row shift; dy = 0/2 shift rows via small MXU matmul.
    acc = jnp.dot(tc, wm_ref[1], preferred_element_type=jnp.float32)
    for dy in (0, 2):
        t_dy = jnp.dot(s_ref[dy], tc,
                       preferred_element_type=jnp.float32).astype(tc.dtype)
        acc = acc + jnp.dot(t_dy, wm_ref[dy], preferred_element_type=jnp.float32)
    acc = acc + b_ref[...]                                      # conv bias (f32)

    y_ref[0] = acc.astype(y_ref.dtype)
    # Single-sweep partial BN statistics (finalized across the batch between kernels).
    ssum_ref[0] = jnp.sum(acc, axis=0, keepdims=True)
    ssq_ref[0] = jnp.sum(acc * acc, axis=0, keepdims=True)


def _bn_prelu_res1x1_kernel(y_ref, sc_ref, sh_ref, a_ref, x_ref, w3_ref, b3_ref,
                            o_ref):
    """Final BN2 apply + PReLU2, fused with the 1x1-conv residual branch + add."""
    t = y_ref[0].astype(jnp.float32) * sc_ref[...] + sh_ref[...]
    t = jnp.where(t >= 0, t, a_ref[...] * t)
    z = jnp.dot(x_ref[0], w3_ref[...], preferred_element_type=jnp.float32)  # block-diag 1x1
    o_ref[0] = (t + z + b3_ref[...]).astype(o_ref.dtype)


# ------------------------------ Host-side prep ------------------------------ #

def _lane(vec_c, W):
    """Per-channel (C,) vector -> (1, W*C), lane index = w*C + c."""
    return jnp.tile(vec_c.reshape(-1), W).reshape(1, -1)


def _block_conv3x3_weights(w_oihw, W):
    """(Cout, Cin, 3, 3) -> (3, W*C, W*C): per-dy block matrices with the dx shift
    and the 'same' zero padding along W folded into the matmul."""
    wk = jnp.transpose(w_oihw, (2, 3, 1, 0))                    # (dy, dx, Cin, Cout)
    mats = []
    for dy in range(3):
        m = 0.0
        for dx in range(3):
            m = m + jnp.kron(jnp.eye(W, k=1 - dx, dtype=w_oihw.dtype), wk[dy, dx])
        mats.append(m)
    return jnp.stack(mats)


def _block_conv1x1_weights(w_oihw, W):
    return jnp.kron(jnp.eye(W, dtype=w_oihw.dtype),
                    jnp.transpose(w_oihw[:, :, 0, 0]))          # (WC, WC)


def _shift_mats(H, dtype):
    """(3, H, H) 0/1 matrices: (S[dy] @ a)[h] = a[h + dy - 1] (zero at image edges)."""
    return jnp.stack([jnp.eye(H, k=dy - 1, dtype=dtype) for dy in range(3)])


def _bn_scale_shift(ssum, ssq, gamma, beta, count, W, C):
    """Fold per-image, per-lane stats into per-channel training-mode BN scale/shift."""
    s1 = jnp.sum(ssum, axis=(0, 1)).reshape(W, C).sum(axis=0)   # (C,)
    s2 = jnp.sum(ssq, axis=(0, 1)).reshape(W, C).sum(axis=0)
    mean = s1 / count
    var = s2 / count - mean * mean                              # biased (training) var
    scale = gamma * jax.lax.rsqrt(var + EPS)
    shift = beta - mean * scale
    return _lane(scale, W), _lane(shift, W)


# ------------------------------ Forward wrapper ------------------------------ #

def residual_block_forward(x_nchw, params, *, compute_dtype=jnp.bfloat16):
    """Pallas implementation of ResidualBlock.forward. Input/output: NCHW f32."""
    N, C, H, W = x_nchw.shape
    WC = W * C
    cdt = jnp.dtype(compute_dtype)
    f32 = jnp.float32

    # NCHW -> lane-dense (N, H, W*C) slab.
    x_lane = jnp.transpose(x_nchw, (0, 2, 3, 1)).reshape(N, H, WC).astype(cdt)

    # Parameter repacking (tiny; plain JAX, fused by XLA).
    wm1 = _block_conv3x3_weights(params["w1"], W).astype(cdt)
    wm2 = _block_conv3x3_weights(params["w2"], W).astype(cdt)
    w3 = _block_conv1x1_weights(params["w3"], W).astype(cdt)
    smat = _shift_mats(H, f32).astype(cdt)
    b1 = _lane(params["b1"], W)
    b2 = _lane(params["b2"], W)
    b3 = _lane(params["b3"], W)
    a1 = jnp.broadcast_to(params["a1"].astype(f32), (1, WC))
    a2 = jnp.broadcast_to(params["a2"].astype(f32), (1, WC))
    ones = jnp.ones((1, WC), f32)
    zeros = jnp.zeros((1, WC), f32)

    cparams = pltpu.CompilerParams(dimension_semantics=("parallel",),
                                   vmem_limit_bytes=32 * 1024 * 1024)

    slab_spec = pl.BlockSpec((1, H, WC), lambda n: (n, 0, 0))
    stat_spec = pl.BlockSpec((1, 1, WC), lambda n: (n, 0, 0))
    vec_spec = pl.BlockSpec((1, WC), lambda n: (0, 0))           # VMEM-resident
    smat_spec = pl.BlockSpec((3, H, H), lambda n: (0, 0, 0))     # VMEM-resident
    wm3_spec = pl.BlockSpec((3, WC, WC), lambda n: (0, 0, 0))    # VMEM-resident
    wm1_spec = pl.BlockSpec((WC, WC), lambda n: (0, 0))          # VMEM-resident

    conv_cost = pl.CostEstimate(
        flops=2 * N * H * WC * (3 * WC + 2 * H),
        transcendentals=0,
        bytes_accessed=int(cdt.itemsize * N * H * WC * 2
                           + cdt.itemsize * (3 * WC * WC + 3 * H * H)
                           + 4 * (2 * N * WC + 4 * WC)))

    def act_conv_layer(x, sc, sh, a, wm, b):
        return pl.pallas_call(
            _act_conv3x3_stats_kernel,
            grid=(N,),
            in_specs=[slab_spec, vec_spec, vec_spec, vec_spec,
                      smat_spec, wm3_spec, vec_spec],
            out_specs=(slab_spec, stat_spec, stat_spec),
            out_shape=(jax.ShapeDtypeStruct((N, H, WC), cdt),
                       jax.ShapeDtypeStruct((N, 1, WC), f32),
                       jax.ShapeDtypeStruct((N, 1, WC), f32)),
            compiler_params=cparams,
            cost_estimate=conv_cost,
        )(x, sc, sh, a, smat, wm, b)

    count = N * H * W
    # conv1 (+ bias) with identity pre-activation; emits BN1 partial stats.
    y1, s1, q1 = act_conv_layer(x_lane, ones, zeros, ones, wm1, b1)
    sc1, sh1 = _bn_scale_shift(s1, q1, params["g1"], params["bt1"], count, W, C)
    # BN1 + PReLU1 apply fused with conv2 (+ bias); emits BN2 partial stats.
    y2, s2, q2 = act_conv_layer(y1, sc1, sh1, a1, wm2, b2)
    sc2, sh2 = _bn_scale_shift(s2, q2, params["g2"], params["bt2"], count, W, C)
    # BN2 + PReLU2 apply fused with the 1x1-conv residual branch + add.
    out = pl.pallas_call(
        _bn_prelu_res1x1_kernel,
        grid=(N,),
        in_specs=[slab_spec, vec_spec, vec_spec, vec_spec,
                  slab_spec, wm1_spec, vec_spec],
        out_specs=slab_spec,
        out_shape=jax.ShapeDtypeStruct((N, H, WC), f32),
        compiler_params=cparams,
        cost_estimate=pl.CostEstimate(
            flops=2 * N * H * WC * WC, transcendentals=0,
            bytes_accessed=int(cdt.itemsize * (2 * N * H * WC + WC * WC)
                               + 4 * (N * H * WC + 4 * WC))),
    )(y2, sc2, sh2, a2, x_lane, w3, b3)

    return jnp.transpose(out.reshape(N, H, W, C), (0, 3, 1, 2))


# ----------------------------- Pure-JAX reference ---------------------------- #

def _ref_conv(x, w, b, pad):
    y = jax.lax.conv_general_dilated(
        x, w, window_strides=(1, 1), padding=((pad, pad), (pad, pad)),
        dimension_numbers=("NCHW", "OIHW", "NCHW"))
    return y + b.reshape(1, -1, 1, 1)


def _ref_bn(x, g, bt):
    mean = jnp.mean(x, axis=(0, 2, 3), keepdims=True)
    var = jnp.mean((x - mean) ** 2, axis=(0, 2, 3), keepdims=True)
    return (x - mean) * jax.lax.rsqrt(var + EPS) * g.reshape(1, -1, 1, 1) \
        + bt.reshape(1, -1, 1, 1)


def _ref_prelu(x, a):
    return jnp.where(x >= 0, x, a * x)


def residual_block_reference(x, p):
    y = _ref_prelu(_ref_bn(_ref_conv(x, p["w1"], p["b1"], 1), p["g1"], p["bt1"]), p["a1"])
    y = _ref_prelu(_ref_bn(_ref_conv(y, p["w2"], p["b2"], 1), p["g2"], p["bt2"]), p["a2"])
    return _ref_conv(x, p["w3"], p["b3"], 0) + y


# ---------------------------------- Main ------------------------------------ #

def make_params(key, c):
    ks = jax.random.split(key, 8)
    f32 = jnp.float32
    return {
        "w1": 0.1 * jax.random.normal(ks[0], (c, c, 3, 3), f32),
        "b1": 0.1 * jax.random.normal(ks[1], (c,), f32),
        "g1": 1.0 + 0.1 * jax.random.normal(ks[2], (c,), f32),
        "bt1": 0.1 * jax.random.normal(ks[3], (c,), f32),
        "a1": jnp.asarray(0.25, f32),            # nn.PReLU() default slope
        "w2": 0.1 * jax.random.normal(ks[4], (c, c, 3, 3), f32),
        "b2": 0.1 * jax.random.normal(ks[5], (c,), f32),
        "g2": 1.0 + 0.1 * jax.random.normal(ks[6], (c,), f32),
        "bt2": 0.1 * jax.random.normal(ks[7], (c,), f32),
        "a2": jnp.asarray(0.25, f32),
        "w3": 0.1 * jax.random.normal(jax.random.fold_in(key, 100), (c, c, 1, 1), f32),
        "b3": 0.1 * jax.random.normal(jax.random.fold_in(key, 101), (c,), f32),
    }


if __name__ == "__main__":
    key = jax.random.PRNGKey(0)
    N, C, H, W = 2, 4, 16, 16
    x = jax.random.normal(jax.random.fold_in(key, 7), (N, C, H, W), jnp.float32)
    params = make_params(key, C)

    fwd = jax.jit(residual_block_forward, static_argnames=("compute_dtype",))
    ref = residual_block_reference(x, params)

    # f32 matmul operands: tight check against the pure-JAX reference.
    out_f32 = jax.block_until_ready(fwd(x, params, compute_dtype=jnp.float32))
    assert out_f32.shape == (N, C, H, W)
    assert jnp.allclose(out_f32, ref, rtol=1e-4, atol=1e-4), \
        float(jnp.max(jnp.abs(out_f32 - ref)))

    # bf16 matmul operands (f32 accumulation, f32 BN/PReLU): loose check —
    # bf16 operand rounding gives ~1e-2-level absolute error on O(1) outputs.
    out_bf16 = jax.block_until_ready(fwd(x, params, compute_dtype=jnp.bfloat16))
    assert out_bf16.shape == (N, C, H, W)
    assert jnp.allclose(out_bf16, ref, rtol=1e-1, atol=1e-1), \
        float(jnp.max(jnp.abs(out_bf16 - ref)))

    print("KERNEL_OK")
</pallas_src>

<mosaic_0001>
module attributes {stable_mosaic.version = 11 : i64} {
  func.func @_act_conv3x3_stats_kernel(%arg0: i32, %arg1: memref<1x16x64xf32, #tpu.memory_space<vmem>>, %arg2: memref<1x64xf32, #tpu.memory_space<vmem>>, %arg3: memref<1x64xf32, #tpu.memory_space<vmem>>, %arg4: memref<1x64xf32, #tpu.memory_space<vmem>>, %arg5: memref<3x16x16xf32, #tpu.memory_space<vmem>>, %arg6: memref<3x64x64xf32, #tpu.memory_space<vmem>>, %arg7: memref<1x64xf32, #tpu.memory_space<vmem>>, %arg8: memref<1x16x64xf32, #tpu.memory_space<vmem>>, %arg9: memref<1x1x64xf32, #tpu.memory_space<vmem>>, %arg10: memref<1x1x64xf32, #tpu.memory_space<vmem>>) attributes {dimension_semantics = [#tpu.dimension_semantics<parallel>], iteration_bounds = array<i64: 2>, scalar_prefetch = 0 : i64, scratch_operands = 0 : i64, tpu.core_type = #tpu.core_type<tc>, window_params = [{transform_indices = @transform_0, window_bounds = array<i64: 1, 16, 64>}, {pipeline_mode = #tpu.pipeline_mode<synchronous>, transform_indices = @transform_1, window_bounds = array<i64: 1, 64>}, {pipeline_mode = #tpu.pipeline_mode<synchronous>, transform_indices = @transform_2, window_bounds = array<i64: 1, 64>}, {pipeline_mode = #tpu.pipeline_mode<synchronous>, transform_indices = @transform_3, window_bounds = array<i64: 1, 64>}, {pipeline_mode = #tpu.pipeline_mode<synchronous>, transform_indices = @transform_4, window_bounds = array<i64: 3, 16, 16>}, {pipeline_mode = #tpu.pipeline_mode<synchronous>, transform_indices = @transform_5, window_bounds = array<i64: 3, 64, 64>}, {pipeline_mode = #tpu.pipeline_mode<synchronous>, transform_indices = @transform_6, window_bounds = array<i64: 1, 64>}, {transform_indices = @transform_7, window_bounds = array<i64: 1, 16, 64>}, {transform_indices = @transform_8, window_bounds = array<i64: 1, 1, 64>}, {transform_indices = @transform_9, window_bounds = array<i64: 1, 1, 64>}]} {
    %c0 = arith.constant 0 : index
    %c0_0 = arith.constant 0 : index
    %c0_1 = arith.constant 0 : index
    %0 = vector.load %arg1[%c0, %c0_0, %c0_1] : memref<1x16x64xf32, #tpu.memory_space<vmem>>, vector<1x16x64xf32>
    %1 = vector.shape_cast %0 : vector<1x16x64xf32> to vector<16x64xf32>
    %c0_2 = arith.constant 0 : index
    %c0_3 = arith.constant 0 : index
    %2 = vector.load %arg2[%c0_2, %c0_3] : memref<1x64xf32, #tpu.memory_space<vmem>>, vector<1x64xf32>
    %3 = vector.broadcast %2 : vector<1x64xf32> to vector<16x64xf32>
    %4 = arith.mulf %1, %3 : vector<16x64xf32>
    %c0_4 = arith.constant 0 : index
    %c0_5 = arith.constant 0 : index
    %5 = vector.load %arg3[%c0_4, %c0_5] : memref<1x64xf32, #tpu.memory_space<vmem>>, vector<1x64xf32>
    %6 = vector.broadcast %5 : vector<1x64xf32> to vector<16x64xf32>
    %7 = arith.addf %4, %6 : vector<16x64xf32>
    %cst = arith.constant 0.000000e+00 : f32
    %8 = vector.broadcast %cst : f32 to vector<16x64xf32>
    %9 = arith.cmpf oge, %7, %8 : vector<16x64xf32>
    %c0_6 = arith.constant 0 : index
    %c0_7 = arith.constant 0 : index
    %10 = vector.load %arg4[%c0_6, %c0_7] : memref<1x64xf32, #tpu.memory_space<vmem>>, vector<1x64xf32>
    %11 = vector.broadcast %10 : vector<1x64xf32> to vector<16x64xf32>
    %12 = arith.mulf %11, %7 : vector<16x64xf32>
    %13 = arith.select %9, %7, %12 : vector<16x64xi1>, vector<16x64xf32>
    %c1 = arith.constant 1 : index
    %c0_8 = arith.constant 0 : index
    %c0_9 = arith.constant 0 : index
    %14 = vector.load %arg6[%c1, %c0_8, %c0_9] : memref<3x64x64xf32, #tpu.memory_space<vmem>>, vector<1x64x64xf32>
    %15 = vector.shape_cast %14 : vector<1x64x64xf32> to vector<64x64xf32>
    %cst_10 = arith.constant dense<0.000000e+00> : vector<16x64xf32>
    %16 = tpu.matmul %13, %15, %cst_10 {dimension_numbers = #tpu.dot_dimension_numbers<[1], [0], [0], [1], [0, 0, 1, 1], [], []>} : vector<16x64xf32>, vector<64x64xf32>, vector<16x64xf32> -> vector<16x64xf32>
    %c0_11 = arith.constant 0 : index
    %c0_12 = arith.constant 0 : index
    %c0_13 = arith.constant 0 : index
    %17 = vector.load %arg5[%c0_11, %c0_12, %c0_13] : memref<3x16x16xf32, #tpu.memory_space<vmem>>, vector<1x16x16xf32>
    %18 = vector.shape_cast %17 : vector<1x16x16xf32> to vector<16x16xf32>
    %cst_14 = arith.constant dense<0.000000e+00> : vector<16x64xf32>
    %19 = tpu.matmul %18, %13, %cst_14 {dimension_numbers = #tpu.dot_dimension_numbers<[1], [0], [0], [1], [0, 0, 1, 1], [], []>} : vector<16x16xf32>, vector<16x64xf32>, vector<16x64xf32> -> vector<16x64xf32>
    %c0_15 = arith.constant 0 : index
    %c0_16 = arith.constant 0 : index
    %c0_17 = arith.constant 0 : index
    %20 = vector.load %arg6[%c0_15, %c0_16, %c0_17] : memref<3x64x64xf32, #tpu.memory_space<vmem>>, vector<1x64x64xf32>
    %21 = vector.shape_cast %20 : vector<1x64x64xf32> to vector<64x64xf32>
    %cst_18 = arith.constant dense<0.000000e+00> : vector<16x64xf32>
    %22 = tpu.matmul %19, %21, %cst_18 {dimension_numbers = #tpu.dot_dimension_numbers<[1], [0], [0], [1], [0, 0, 1, 1], [], []>} : vector<16x64xf32>, vector<64x64xf32>, vector<16x64xf32> -> vector<16x64xf32>
    %23 = arith.addf %16, %22 : vector<16x64xf32>
    %c2 = arith.constant 2 : index
    %c0_19 = arith.constant 0 : index
    %c0_20 = arith.constant 0 : index
    %24 = vector.load %arg5[%c2, %c0_19, %c0_20] : memref<3x16x16xf32, #tpu.memory_space<vmem>>, vector<1x16x16xf32>
    %25 = vector.shape_cast %24 : vector<1x16x16xf32> to vector<16x16xf32>
    %cst_21 = arith.constant dense<0.000000e+00> : vector<16x64xf32>
    %26 = tpu.matmul %25, %13, %cst_21 {dimension_numbers = #tpu.dot_dimension_numbers<[1], [0], [0], [1], [0, 0, 1, 1], [], []>} : vector<16x16xf32>, vector<16x64xf32>, vector<16x64xf32> -> vector<16x64xf32>
    %c2_22 = arith.constant 2 : index
    %c0_23 = arith.constant 0 : index
    %c0_24 = arith.constant 0 : index
    %27 = vector.load %arg6[%c2_22, %c0_23, %c0_24] : memref<3x64x64xf32, #tpu.memory_space<vmem>>, vector<1x64x64xf32>
    %28 = vector.shape_cast %27 : vector<1x64x64xf32> to vector<64x64xf32>
    %cst_25 = arith.constant dense<0.000000e+00> : vector<16x64xf32>
    %29 = tpu.matmul %26, %28, %cst_25 {dimension_numbers = #tpu.dot_dimension_numbers<[1], [0], [0], [1], [0, 0, 1, 1], [], []>} : vector<16x64xf32>, vector<64x64xf32>, vector<16x64xf32> -> vector<16x64xf32>
    %30 = arith.addf %23, %29 : vector<16x64xf32>
    %c0_26 = arith.constant 0 : index
    %c0_27 = arith.constant 0 : index
    %31 = vector.load %arg7[%c0_26, %c0_27] : memref<1x64xf32, #tpu.memory_space<vmem>>, vector<1x64xf32>
    %32 = vector.broadcast %31 : vector<1x64xf32> to vector<16x64xf32>
    %33 = arith.addf %30, %32 : vector<16x64xf32>
    %c0_28 = arith.constant 0 : index
    %c0_29 = arith.constant 0 : index
    %c0_30 = arith.constant 0 : index
    %34 = vector.load %arg8[%c0_28, %c0_29, %c0_30] : memref<1x16x64xf32, #tpu.memory_space<vmem>>, vector<1x16x64xf32>
    %35 = vector.shape_cast %34 : vector<1x16x64xf32> to vector<16x64xf32>
    %36 = vector.shape_cast %33 : vector<16x64xf32> to vector<1x16x64xf32>
    tpu.vector_store %arg8[%c0_28, %c0_29, %c0_30], %36 {strides = array<i32>} : memref<1x16x64xf32, #tpu.memory_space<vmem>>, vector<1x16x64xf32>,
    %cst_31 = arith.constant dense<0.000000e+00> : vector<64xf32>
    %37 = vector.multi_reduction <add>, %33, %cst_31 [0] : vector<16x64xf32> to vector<64xf32>
    %38 = vector.shape_cast %37 : vector<64xf32> to vector<1x64xf32>
    %c0_32 = arith.constant 0 : index
    %c0_33 = arith.constant 0 : index
    %c0_34 = arith.constant 0 : index
    %39 = vector.load %arg9[%c0_32, %c0_33, %c0_34] : memref<1x1x64xf32, #tpu.memory_space<vmem>>, vector<1x1x64xf32>
    %40 = vector.shape_cast %39 : vector<1x1x64xf32> to vector<1x64xf32>
    %41 = vector.shape_cast %38 : vector<1x64xf32> to vector<1x1x64xf32>
    tpu.vector_store %arg9[%c0_32, %c0_33, %c0_34], %41 {strides = array<i32>} : memref<1x1x64xf32, #tpu.memory_space<vmem>>, vector<1x1x64xf32>,
    %42 = arith.mulf %33, %33 : vector<16x64xf32>
    %cst_35 = arith.constant dense<0.000000e+00> : vector<64xf32>
    %43 = vector.multi_reduction <add>, %42, %cst_35 [0] : vector<16x64xf32> to vector<64xf32>
    %44 = vector.shape_cast %43 : vector<64xf32> to vector<1x64xf32>
    %c0_36 = arith.constant 0 : index
    %c0_37 = arith.constant 0 : index
    %c0_38 = arith.constant 0 : index
    %45 = vector.load %arg10[%c0_36, %c0_37, %c0_38] : memref<1x1x64xf32, #tpu.memory_space<vmem>>, vector<1x1x64xf32>
    %46 = vector.shape_cast %45 : vector<1x1x64xf32> to vector<1x64xf32>
    %47 = vector.shape_cast %44 : vector<1x64xf32> to vector<1x1x64xf32>
    tpu.vector_store %arg10[%c0_36, %c0_37, %c0_38], %47 {strides = array<i32>} : memref<1x1x64xf32, #tpu.memory_space<vmem>>, vector<1x1x64xf32>,
    return
  }
  func.func @transform_0(%arg0: i32) -> (i32, i32, i32) {
    %c0_i32 = arith.constant 0 : i32
    %c0_i32_0 = arith.constant 0 : i32
    %c0_i32_1 = arith.constant 0 : i32
    return %arg0, %c0_i32, %c0_i32_0 : i32, i32, i32
  }
  func.func @transform_1(%arg0: i32) -> (i32, i32) {
    %c0_i32 = arith.constant 0 : i32
    %c0_i32_0 = arith.constant 0 : i32
    %c0_i32_1 = arith.constant 0 : i32
    return %c0_i32, %c0_i32_0 : i32, i32
  }
  func.func @transform_2(%arg0: i32) -> (i32, i32) {
    %c0_i32 = arith.constant 0 : i32
    %c0_i32_0 = arith.constant 0 : i32
    %c0_i32_1 = arith.constant 0 : i32
    return %c0_i32, %c0_i32_0 : i32, i32
  }
  func.func @transform_3(%arg0: i32) -> (i32, i32) {
    %c0_i32 = arith.constant 0 : i32
    %c0_i32_0 = arith.constant 0 : i32
    %c0_i32_1 = arith.constant 0 : i32
    return %c0_i32, %c0_i32_0 : i32, i32
  }
  func.func @transform_4(%arg0: i32) -> (i32, i32, i32) {
    %c0_i32 = arith.constant 0 : i32
    %c0_i32_0 = arith.constant 0 : i32
    %c0_i32_1 = arith.constant 0 : i32
    %c0_i32_2 = arith.constant 0 : i32
    return %c0_i32, %c0_i32_0, %c0_i32_1 : i32, i32, i32
  }
  func.func @transform_5(%arg0: i32) -> (i32, i32, i32) {
    %c0_i32 = arith.constant 0 : i32
    %c0_i32_0 = arith.constant 0 : i32
    %c0_i32_1 = arith.constant 0 : i32
    %c0_i32_2 = arith.constant 0 : i32
    return %c0_i32, %c0_i32_0, %c0_i32_1 : i32, i32, i32
  }
  func.func @transform_6(%arg0: i32) -> (i32, i32) {
    %c0_i32 = arith.constant 0 : i32
    %c0_i32_0 = arith.constant 0 : i32
    %c0_i32_1 = arith.constant 0 : i32
    return %c0_i32, %c0_i32_0 : i32, i32
  }
  func.func @transform_7(%arg0: i32) -> (i32, i32, i32) {
    %c0_i32 = arith.constant 0 : i32
    %c0_i32_0 = arith.constant 0 : i32
    %c0_i32_1 = arith.constant 0 : i32
    return %arg0, %c0_i32, %c0_i32_0 : i32, i32, i32
  }
  func.func @transform_8(%arg0: i32) -> (i32, i32, i32) {
    %c0_i32 = arith.constant 0 : i32
    %c0_i32_0 = arith.constant 0 : i32
    %c0_i32_1 = arith.constant 0 : i32
    return %arg0, %c0_i32, %c0_i32_0 : i32, i32, i32
  }
  func.func @transform_9(%arg0: i32) -> (i32, i32, i32) {
    %c0_i32 = arith.constant 0 : i32
    %c0_i32_0 = arith.constant 0 : i32
    %c0_i32_1 = arith.constant 0 : i32
    return %arg0, %c0_i32, %c0_i32_0 : i32, i32, i32
  }
}

module attributes {stable_mosaic.version = 11 : i64} {
  func.func @_bn_prelu_res1x1_kernel(%arg0: i32, %arg1: memref<1x16x64xf32, #tpu.memory_space<vmem>>, %arg2: memref<1x64xf32, #tpu.memory_space<vmem>>, %arg3: memref<1x64xf32, #tpu.memory_space<vmem>>, %arg4: memref<1x64xf32, #tpu.memory_space<vmem>>, %arg5: memref<1x16x64xf32, #tpu.memory_space<vmem>>, %arg6: memref<64x64xf32, #tpu.memory_space<vmem>>, %arg7: memref<1x64xf32, #tpu.memory_space<vmem>>, %arg8: memref<1x16x64xf32, #tpu.memory_space<vmem>>) attributes {dimension_semantics = [#tpu.dimension_semantics<parallel>], iteration_bounds = array<i64: 2>, scalar_prefetch = 0 : i64, scratch_operands = 0 : i64, tpu.core_type = #tpu.core_type<tc>, window_params = [{transform_indices = @transform_0, window_bounds = array<i64: 1, 16, 64>}, {pipeline_mode = #tpu.pipeline_mode<synchronous>, transform_indices = @transform_1, window_bounds = array<i64: 1, 64>}, {pipeline_mode = #tpu.pipeline_mode<synchronous>, transform_indices = @transform_2, window_bounds = array<i64: 1, 64>}, {pipeline_mode = #tpu.pipeline_mode<synchronous>, transform_indices = @transform_3, window_bounds = array<i64: 1, 64>}, {transform_indices = @transform_4, window_bounds = array<i64: 1, 16, 64>}, {pipeline_mode = #tpu.pipeline_mode<synchronous>, transform_indices = @transform_5, window_bounds = array<i64: 64, 64>}, {pipeline_mode = #tpu.pipeline_mode<synchronous>, transform_indices = @transform_6, window_bounds = array<i64: 1, 64>}, {transform_indices = @transform_7, window_bounds = array<i64: 1, 16, 64>}]} {
    %c0 = arith.constant 0 : index
    %c0_0 = arith.constant 0 : index
    %c0_1 = arith.constant 0 : index
    %0 = vector.load %arg1[%c0, %c0_0, %c0_1] : memref<1x16x64xf32, #tpu.memory_space<vmem>>, vector<1x16x64xf32>
    %1 = vector.shape_cast %0 : vector<1x16x64xf32> to vector<16x64xf32>
    %c0_2 = arith.constant 0 : index
    %c0_3 = arith.constant 0 : index
    %2 = vector.load %arg2[%c0_2, %c0_3] : memref<1x64xf32, #tpu.memory_space<vmem>>, vector<1x64xf32>
    %3 = vector.broadcast %2 : vector<1x64xf32> to vector<16x64xf32>
    %4 = arith.mulf %1, %3 : vector<16x64xf32>
    %c0_4 = arith.constant 0 : index
    %c0_5 = arith.constant 0 : index
    %5 = vector.load %arg3[%c0_4, %c0_5] : memref<1x64xf32, #tpu.memory_space<vmem>>, vector<1x64xf32>
    %6 = vector.broadcast %5 : vector<1x64xf32> to vector<16x64xf32>
    %7 = arith.addf %4, %6 : vector<16x64xf32>
    %cst = arith.constant 0.000000e+00 : f32
    %8 = vector.broadcast %cst : f32 to vector<16x64xf32>
    %9 = arith.cmpf oge, %7, %8 : vector<16x64xf32>
    %c0_6 = arith.constant 0 : index
    %c0_7 = arith.constant 0 : index
    %10 = vector.load %arg4[%c0_6, %c0_7] : memref<1x64xf32, #tpu.memory_space<vmem>>, vector<1x64xf32>
    %11 = vector.broadcast %10 : vector<1x64xf32> to vector<16x64xf32>
    %12 = arith.mulf %11, %7 : vector<16x64xf32>
    %13 = arith.select %9, %7, %12 : vector<16x64xi1>, vector<16x64xf32>
    %c0_8 = arith.constant 0 : index
    %c0_9 = arith.constant 0 : index
    %c0_10 = arith.constant 0 : index
    %14 = vector.load %arg5[%c0_8, %c0_9, %c0_10] : memref<1x16x64xf32, #tpu.memory_space<vmem>>, vector<1x16x64xf32>
    %15 = vector.shape_cast %14 : vector<1x16x64xf32> to vector<16x64xf32>
    %c0_11 = arith.constant 0 : index
    %c0_12 = arith.constant 0 : index
    %16 = vector.load %arg6[%c0_11, %c0_12] : memref<64x64xf32, #tpu.memory_space<vmem>>, vector<64x64xf32>
    %cst_13 = arith.constant dense<0.000000e+00> : vector<16x64xf32>
    %17 = tpu.matmul %15, %16, %cst_13 {dimension_numbers = #tpu.dot_dimension_numbers<[1], [0], [0], [1], [0, 0, 1, 1], [], []>} : vector<16x64xf32>, vector<64x64xf32>, vector<16x64xf32> -> vector<16x64xf32>
    %18 = arith.addf %13, %17 : vector<16x64xf32>
    %c0_14 = arith.constant 0 : index
    %c0_15 = arith.constant 0 : index
    %19 = vector.load %arg7[%c0_14, %c0_15] : memref<1x64xf32, #tpu.memory_space<vmem>>, vector<1x64xf32>
    %20 = vector.broadcast %19 : vector<1x64xf32> to vector<16x64xf32>
    %21 = arith.addf %18, %20 : vector<16x64xf32>
    %c0_16 = arith.constant 0 : index
    %c0_17 = arith.constant 0 : index
    %c0_18 = arith.constant 0 : index
    %22 = vector.load %arg8[%c0_16, %c0_17, %c0_18] : memref<1x16x64xf32, #tpu.memory_space<vmem>>, vector<1x16x64xf32>
    %23 = vector.shape_cast %22 : vector<1x16x64xf32> to vector<16x64xf32>
    %24 = vector.shape_cast %21 : vector<16x64xf32> to vector<1x16x64xf32>
    tpu.vector_store %arg8[%c0_16, %c0_17, %c0_18], %24 {strides = array<i32>} : memref<1x16x64xf32, #tpu.memory_space<vmem>>, vector<1x16x64xf32>,
    return
  }
  func.func @transform_0(%arg0: i32) -> (i32, i32, i32) {
    %c0_i32 = arith.constant 0 : i32
    %c0_i32_0 = arith.constant 0 : i32
    %c0_i32_1 = arith.constant 0 : i32
    return %arg0, %c0_i32, %c0_i32_0 : i32, i32, i32
  }
  func.func @transform_1(%arg0: i32) -> (i32, i32) {
    %c0_i32 = arith.constant 0 : i32
    %c0_i32_0 = arith.constant 0 : i32
    %c0_i32_1 = arith.constant 0 : i32
    return %c0_i32, %c0_i32_0 : i32, i32
  }
  func.func @transform_2(%arg0: i32) -> (i32, i32) {
    %c0_i32 = arith.constant 0 : i32
    %c0_i32_0 = arith.constant 0 : i32
    %c0_i32_1 = arith.constant 0 : i32
    return %c0_i32, %c0_i32_0 : i32, i32
  }
  func.func @transform_3(%arg0: i32) -> (i32, i32) {
    %c0_i32 = arith.constant 0 : i32
    %c0_i32_0 = arith.constant 0 : i32
    %c0_i32_1 = arith.constant 0 : i32
    return %c0_i32, %c0_i32_0 : i32, i32
  }
  func.func @transform_4(%arg0: i32) -> (i32, i32, i32) {
    %c0_i32 = arith.constant 0 : i32
    %c0_i32_0 = arith.constant 0 : i32
    %c0_i32_1 = arith.constant 0 : i32
    return %arg0, %c0_i32, %c0_i32_0 : i32, i32, i32
  }
  func.func @transform_5(%arg0: i32) -> (i32, i32) {
    %c0_i32 = arith.constant 0 : i32
    %c0_i32_0 = arith.constant 0 : i32
    %c0_i32_1 = arith.constant 0 : i32
    return %c0_i32, %c0_i32_0 : i32, i32
  }
  func.func @transform_6(%arg0: i32) -> (i32, i32) {
    %c0_i32 = arith.constant 0 : i32
    %c0_i32_0 = arith.constant 0 : i32
    %c0_i32_1 = arith.constant 0 : i32
    return %c0_i32, %c0_i32_0 : i32, i32
  }
  func.func @transform_7(%arg0: i32) -> (i32, i32, i32) {
    %c0_i32 = arith.constant 0 : i32
    %c0_i32_0 = arith.constant 0 : i32
    %c0_i32_1 = arith.constant 0 : i32
    return %arg0, %c0_i32, %c0_i32_0 : i32, i32, i32
  }
}

</mosaic_0001>

<llo_original>
// kernel: tile.38
$region0: #{tile.38}
  #allocation0 [shape = 's32[1]{0}', space=sflag, size = 0x4, scoped, tag = 'scoped memory for tile.38']
  %s0 = inlined_call_operand.vmem [shape: f32[4], index: 0, kind: input, shape index: {}]
  %s1 = inlined_call_operand.vmem [shape: f32[16,4], index: 1, kind: output, shape index: {}]
  // Predicated region
  $region2: #{tile.38} parent=0 // pred_check
    _
  $region3: #{tile.38} parent=0 // pred_check_branch
    %3 = sbr.rel (0) target = $region5
  $region4: #{tile.38} parent=0 // pred_region
    _
  $region5: #{tile.38} parent=0 // pred_fallthru
    _
  %v4 = vld [vmem:[%s0] ss:$0 sm:$0xff]
  %5 = vst [vmem:[%s1] sm:$0xff] %v4
  %s6 = scalar_lea.vmem %s1, 8
  %7 = vst [vmem:[%s6] sm:$0xff] %v4

// kernel: tile.39
$region0: #{tile.39}
  %s0 = inlined_call_operand.vmem [shape: f32[16,4], index: 0, kind: input, shape index: {}]
  %s1 = inlined_call_operand.vmem [shape: f32[1,64], index: 1, kind: output, shape index: {}]
  $region1: #{tile.39} parent=0
    #allocation0 [shape = 'u8[4096]{0}', space=vmem, size = 0x1000, scoped, tag = 'scoped mem for output reshape']
    %v2 = vld [vmem:[%s0] sm:$0x1]
    %vm3 = vcmask 31744
    %4 = vst.msk [vmem:[#allocation0] sm:$0x1] %vm3, %v2
    %s5 = scalar_lea.vmem %s0, 15
    %v6 = vld [vmem:[%s5] sm:$0x1]
    %7 = vrot.lane.b32.xlu0 %v6, 60
    %v8 = vpop.permute.xlu0 %7
    %vm9 = vcmask 523744
    %10 = vst.msk [vmem:[#allocation0] sm:$0x1] %vm9, %v8
    %s11 = scalar_lea.vmem %s0, 14
    %v12 = vld [vmem:[%s11] sm:$0x1]
    %13 = vrot.lane.b32.xlu0 %v12, 56
    %v14 = vpop.permute.xlu0 %13
    %vm15 = vcmask 490944
    %16 = vst.msk [vmem:[#allocation0] sm:$0x1] %vm15, %v14
    %s17 = scalar_lea.vmem %s0, 13
    %v18 = vld [vmem:[%s17] sm:$0x1]
    %19 = vrot.lane.b32.xlu0 %v18, 52
    %v20 = vpop.permute.xlu0 %19
    %vm21 = vcmask 458144
    %22 = vst.msk [vmem:[#allocation0] sm:$0x1] %vm21, %v20
    %s23 = scalar_lea.vmem %s0, 12
    %v24 = vld [vmem:[%s23] sm:$0x1]
    %25 = vrot.lane.b32.xlu0 %v24, 48
    %v26 = vpop.permute.xlu0 %25
    %vm27 = vcmask 425344
    %28 = vst.msk [vmem:[#allocation0] sm:$0x1] %vm27, %v26
    %s29 = scalar_lea.vmem %s0, 11
    %v30 = vld [vmem:[%s29] sm:$0x1]
    %31 = vrot.lane.b32.xlu0 %v30, 44
    %v32 = vpop.permute.xlu0 %31
    %vm33 = vcmask 392544
    %34 = vst.msk [vmem:[#allocation0] sm:$0x1] %vm33, %v32
    %s35 = scalar_lea.vmem %s0, 10
    %v36 = vld [vmem:[%s35] sm:$0x1]
    %37 = vrot.lane.b32.xlu0 %v36, 40
    %v38 = vpop.permute.xlu0 %37
    %vm39 = vcmask 359744
    %40 = vst.msk [vmem:[#allocation0] sm:$0x1] %vm39, %v38
    %s41 = scalar_lea.vmem %s0, 9
    %v42 = vld [vmem:[%s41] sm:$0x1]
    %43 = vrot.lane.b32.xlu0 %v42, 36
    %v44 = vpop.permute.xlu0 %43
    %vm45 = vcmask 326944
    %46 = vst.msk [vmem:[#allocation0] sm:$0x1] %vm45, %v44
    %s47 = scalar_lea.vmem %s0, 8
    %v48 = vld [vmem:[%s47] sm:$0x1]
    %49 = vrot.lane.b32.xlu0 %v48, 32
    %v50 = vpop.permute.xlu0 %49
    %vm51 = vcmask 294144
    %52 = vst.msk [vmem:[#allocation0] sm:$0x1] %vm51, %v50
    %s53 = scalar_lea.vmem %s0, 7
    %v54 = vld [vmem:[%s53] sm:$0x1]
    %55 = vrot.lane.b32.xlu0 %v54, 28
    %v56 = vpop.permute.xlu0 %55
    %vm57 = vcmask 261344
    %58 = vst.msk [vmem:[#allocation0] sm:$0x1] %vm57, %v56
    %s59 = scalar_lea.vmem %s0, 6
    %v60 = vld [vmem:[%s59] sm:$0x1]
    %61 = vrot.lane.b32.xlu0 %v60, 24
    %v62 = vpop.permute.xlu0 %61
    %vm63 = vcmask 228544
    %64 = vst.msk [vmem:[#allocation0] sm:$0x1] %vm63, %v62
    %s65 = scalar_lea.vmem %s0, 5
    %v66 = vld [vmem:[%s65] sm:$0x1]
    %67 = vrot.lane.b32.xlu0 %v66, 20
    %v68 = vpop.permute.xlu0 %67
    %vm69 = vcmask 195744
    %70 = vst.msk [vmem:[#allocation0] sm:$0x1] %vm69, %v68
    %s71 = scalar_lea.vmem %s0, 4
    %v72 = vld [vmem:[%s71] sm:$0x1]
    %73 = vrot.lane.b32.xlu0 %v72, 16
    %v74 = vpop.permute.xlu0 %73
    %vm75 = vcmask 162944
    %76 = vst.msk [vmem:[#allocation0] sm:$0x1] %vm75, %v74
    %s77 = scalar_lea.vmem %s0, 3
    %v78 = vld [vmem:[%s77] sm:$0x1]
    %79 = vrot.lane.b32.xlu0 %v78, 12
    %v80 = vpop.permute.xlu0 %79
    %vm81 = vcmask 130144
    %82 = vst.msk [vmem:[#allocation0] sm:$0x1] %vm81, %v80
    %s83 = scalar_lea.vmem %s0, 2
    %v84 = vld [vmem:[%s83] sm:$0x1]
    %85 = vrot.lane.b32.xlu0 %v84, 8
    %v86 = vpop.permute.xlu0 %85
    %vm87 = vcmask 97344
    %88 = vst.msk [vmem:[#allocation0] sm:$0x1] %vm87, %v86
    %s89 = scalar_lea.vmem %s0, 1
    %v90 = vld [vmem:[%s89] sm:$0x1]
    %91 = vrot.lane.b32.xlu0 %v90, 4
    %v92 = vpop.permute.xlu0 %91
    %vm93 = vcmask 64544
    %94 = vst.msk [vmem:[#allocation0] sm:$0x1] %vm93, %v92
    %s96 = sshllo.u32 0, 1
    %v98 = vld [vmem:[#allocation0] sm:%s96]
    %s99 = sshllo.u32 0, 1
    %100 = vst [vmem:[%s1] sm:%s99] %v98

// kernel: residual_block_forward.5
$region0: #{residual_block_forward.5}
  #allocation0 [shape = 'u32[]', space=smem, size = 0x4, offset = 0x4, fixed_abs, tag = 'smem constant byte address 0x4 - core index']
  #allocation1 [shape = 'u32[144,128]{1,0:T(1,128)}', space=vmem, size = 0x12000, scoped, tag = 'internal scratch']
  %s0 = inlined_call_operand.vmem [shape: f32[2,16,64], index: 0, kind: input, shape index: {}]
  %s1 = inlined_call_operand.vmem [shape: f32[1,64], index: 1, kind: input, shape index: {}]
  %s2 = inlined_call_operand.vmem [shape: f32[1,64], index: 2, kind: input, shape index: {}]
  %s3 = inlined_call_operand.vmem [shape: f32[1,64], index: 3, kind: input, shape index: {}]
  %s4 = inlined_call_operand.vmem [shape: f32[2,16,64], index: 4, kind: input, shape index: {}]
  %s5 = inlined_call_operand.vmem [shape: f32[64,64], index: 5, kind: input, shape index: {}]
  %s6 = inlined_call_operand.vmem [shape: f32[1,64], index: 6, kind: input, shape index: {}]
  %s7 = inlined_call_operand.vmem [shape: f32[2,16,64], index: 7, kind: output, shape index: {}]
  %s8 = sld [smem:[#allocation0]]
  $region61: #{residual_block_forward.5} parent=0
    _
  %s10 = ssub.s32 1, %s8
  %s11 = scalar_select 0, %s10, %s8
  loop: start=0, step=1, limit=4
  $region2: #{residual_block_forward.5} parent=0 // loop_pre_header
    _
  $region3: #{residual_block_forward.5} parent=0 // loop_header
    %s13 = sphi 0, %s17
    %p14 = scmp.ge.s32.totalorder %s13, 4
    %s23 = sphi 0, %s25
    %s26 = sphi 0, %s23
    %s27 = sphi 0, %s26
    %s43 = sphi 0, %s27
    %s47 = sphi 0, %s47
    %s49 = sphi 0, %s47
    %s50 = sphi 0, %s49
    %s64 = sphi 0, %s50
    %s68 = sphi 0, %s68
    %s70 = sphi 0, %s68
    %s71 = sphi 0, %s70
    %s85 = sphi 0, %s71
    %s89 = sphi 0, %s89
    %s91 = sphi 0, %s89
    %s92 = sphi 0, %s91
    %s106 = sphi 0, %s92
    %s112 = sphi 0, %s114
    %s115 = sphi 0, %s112
    %s116 = sphi 0, %s115
    %s132 = sphi 0, %s116
    %s136 = sphi 0, %s136
    %s138 = sphi 0, %s136
    %s139 = sphi 0, %s138
    %s153 = sphi 0, %s139
    %s157 = sphi 0, %s157
    %s159 = sphi 0, %s157
    %s160 = sphi 0, %s159
    %s174 = sphi 0, %s160
    %s180 = sphi 0, %s182
    %s183 = sphi 0, %s180
    %s184 = sphi 0, %s183
    %s200 = sphi 0, %s184
  $region4: #{residual_block_forward.5} parent=0 // loop_header_branch
    %16 = sbr.rel (%p14) target = $region8
  $region5: #{residual_block_forward.5} parent=0 // loop_body
    %s18 = ssub.s32 %s13, 1
    %s19 = ssub.s32 %s13, 2
    %s20 = sadd.s32 %s13, 1
    %s21 = ssub.s32 %s13, %s20
    %p22 = scmp.eq.s32.totalorder %s21, 0
    %s24 = sadd.s32 %s23, 1
    %s25 = scalar_select %p22, %s23, %s24
    %p28 = pneg %p22
    %p29 = scmp.eq.s32.totalorder %s13, 1
    %p30 = por %p28, %p29
    %p31 = scmp.ne.s32.totalorder %s23, %s26
    %p32 = scmp.eq.s32.totalorder %s13, 0
    %p33 = por %p31, %p32
    %p34 = scmp.ne.s32.totalorder %s23, %s26
    %p35 = scmp.eq.s32.totalorder %s18, 1
    %p36 = por %p34, %p35
    %p37 = scmp.ne.s32.totalorder %s26, %s27
    %p38 = scmp.eq.s32.totalorder %s18, 0
    %p39 = por %p37, %p38
    %p40 = scmp.ne.s32.totalorder %s26, %s27
    %p41 = scmp.eq.s32.totalorder %s19, 1
    %p42 = por %p40, %p41
    %p44 = scmp.ne.s32.totalorder %s27, %s43
    %p45 = scmp.eq.s32.totalorder %s19, 0
    %p46 = por %p44, %p45
    %s48 = sadd.s32 %s47, 1
    %p51 = scmp.eq.s32.totalorder %s13, 1
    %p52 = scmp.ne.s32.totalorder %s47, %s49
    %p53 = scmp.eq.s32.totalorder %s13, 0
    %p54 = por %p52, %p53
    %p55 = scmp.ne.s32.totalorder %s47, %s49
    %p56 = scmp.eq.s32.totalorder %s18, 1
    %p57 = por %p55, %p56
    %p58 = scmp.ne.s32.totalorder %s49, %s50
    %p59 = scmp.eq.s32.totalorder %s18, 0
    %p60 = por %p58, %p59
    %p61 = scmp.ne.s32.totalorder %s49, %s50
    %p62 = scmp.eq.s32.totalorder %s19, 1
    %p63 = por %p61, %p62
    %p65 = scmp.ne.s32.totalorder %s50, %s64
    %p66 = scmp.eq.s32.totalorder %s19, 0
    %p67 = por %p65, %p66
    %s69 = sadd.s32 %s68, 1
    %p72 = scmp.eq.s32.totalorder %s13, 1
    %p73 = scmp.ne.s32.totalorder %s68, %s70
    %p74 = scmp.eq.s32.totalorder %s13, 0
    %p75 = por %p73, %p74
    %p76 = scmp.ne.s32.totalorder %s68, %s70
    %p77 = scmp.eq.s32.totalorder %s18, 1
    %p78 = por %p76, %p77
    %p79 = scmp.ne.s32.totalorder %s70, %s71
    %p80 = scmp.eq.s32.totalorder %s18, 0
    %p81 = por %p79, %p80
    %p82 = scmp.ne.s32.totalorder %s70, %s71
    %p83 = scmp.eq.s32.totalorder %s19, 1
    %p84 = por %p82, %p83
    %p86 = scmp.ne.s32.totalorder %s71, %s85
    %p87 = scmp.eq.s32.totalorder %s19, 0
    %p88 = por %p86, %p87
    %s90 = sadd.s32 %s89, 1
    %p93 = scmp.eq.s32.totalorder %s13, 1
    %p94 = scmp.ne.s32.totalorder %s89, %s91
    %p95 = scmp.eq.s32.totalorder %s13, 0
    %p96 = por %p94, %p95
    %p97 = scmp.ne.s32.totalorder %s89, %s91
    %p98 = scmp.eq.s32.totalorder %s18, 1
    %p99 = por %p97, %p98
    %p100 = scmp.ne.s32.totalorder %s91, %s92
    %p101 = scmp.eq.s32.totalorder %s18, 0
    %p102 = por %p100, %p101
    %p103 = scmp.ne.s32.totalorder %s91, %s92
    %p104 = scmp.eq.s32.totalorder %s19, 1
    %p105 = por %p103, %p104
    %p107 = scmp.ne.s32.totalorder %s92, %s106
    %p108 = scmp.eq.s32.totalorder %s19, 0
    %p109 = por %p107, %p108
    %s110 = ssub.s32 %s13, %s20
    %p111 = scmp.eq.s32.totalorder %s110, 0
    %s113 = sadd.s32 %s112, 1
    %s114 = scalar_select %p111, %s112, %s113
    %p117 = pneg %p111
    %p118 = scmp.eq.s32.totalorder %s13, 1
    %p119 = por %p117, %p118
    %p120 = scmp.ne.s32.totalorder %s112, %s115
    %p121 = scmp.eq.s32.totalorder %s13, 0
    %p122 = por %p120, %p121
    %p123 = scmp.ne.s32.totalorder %s112, %s115
    %p124 = scmp.eq.s32.totalorder %s18, 1
    %p125 = por %p123, %p124
    %p126 = scmp.ne.s32.totalorder %s115, %s116
    %p127 = scmp.eq.s32.totalorder %s18, 0
    %p128 = por %p126, %p127
    %p129 = scmp.ne.s32.totalorder %s115, %s116
    %p130 = scmp.eq.s32.totalorder %s19, 1
    %p131 = por %p129, %p130
    %p133 = scmp.ne.s32.totalorder %s116, %s132
    %p134 = scmp.eq.s32.totalorder %s19, 0
    %p135 = por %p133, %p134
    %s137 = sadd.s32 %s136, 1
    %p140 = scmp.eq.s32.totalorder %s13, 1
    %p141 = scmp.ne.s32.totalorder %s136, %s138
    %p142 = scmp.eq.s32.totalorder %s13, 0
    %p143 = por %p141, %p142
    %p144 = scmp.ne.s32.totalorder %s136, %s138
    %p145 = scmp.eq.s32.totalorder %s18, 1
    %p146 = por %p144, %p145
    %p147 = scmp.ne.s32.totalorder %s138, %s139
    %p148 = scmp.eq.s32.totalorder %s18, 0
    %p149 = por %p147, %p148
    %p150 = scmp.ne.s32.totalorder %s138, %s139
    %p151 = scmp.eq.s32.totalorder %s19, 1
    %p152 = por %p150, %p151
    %p154 = scmp.ne.s32.totalorder %s139, %s153
    %p155 = scmp.eq.s32.totalorder %s19, 0
    %p156 = por %p154, %p155
    %s158 = sadd.s32 %s157, 1
    %p161 = scmp.eq.s32.totalorder %s13, 1
    %p162 = scmp.ne.s32.totalorder %s157, %s159
    %p163 = scmp.eq.s32.totalorder %s13, 0
    %p164 = por %p162, %p163
    %p165 = scmp.ne.s32.totalorder %s157, %s159
    %p166 = scmp.eq.s32.totalorder %s18, 1
    %p167 = por %p165, %p166
    %p168 = scmp.ne.s32.totalorder %s159, %s160
    %p169 = scmp.eq.s32.totalorder %s18, 0
    %p170 = por %p168, %p169
    %p171 = scmp.ne.s32.totalorder %s159, %s160
    %p172 = scmp.eq.s32.totalorder %s19, 1
    %p173 = por %p171, %p172
    %p175 = scmp.ne.s32.totalorder %s160, %s174
    %p176 = scmp.eq.s32.totalorder %s19, 0
    %p177 = por %p175, %p176
    %s178 = ssub.s32 %s13, %s20
    %p179 = scmp.eq.s32.totalorder %s178, 0
    %s181 = sadd.s32 %s180, 1
    %s182 = scalar_select %p179, %s180, %s181
    %p185 = pneg %p179
    %p186 = scmp.eq.s32.totalorder %s13, 1
    %p187 = por %p185, %p186
    %p188 = scmp.ne.s32.totalorder %s180, %s183
    %p189 = scmp.eq.s32.totalorder %s13, 0
    %p190 = por %p188, %p189
    %p191 = scmp.ne.s32.totalorder %s180, %s183
    %p192 = scmp.eq.s32.totalorder %s18, 1
    %p193 = por %p191, %p192
    %p194 = scmp.ne.s32.totalorder %s183, %s184
    %p195 = scmp.eq.s32.totalorder %s18, 0
    %p196 = por %p194, %p195
    %p197 = scmp.ne.s32.totalorder %s183, %s184
    %p198 = scmp.eq.s32.totalorder %s19, 1
    %p199 = por %p197, %p198
    %p201 = scmp.ne.s32.totalorder %s184, %s200
    %p202 = scmp.eq.s32.totalorder %s19, 0
    %p203 = por %p201, %p202
    %p204 = scmp.le.s32.totalorder 1, %s13
    %p205 = scmp.lt.s32.totalorder %s13, 3
    %p206 = pnand %p204, %p205
    %p207 = pneg %p206
    // Predicated region
    $region9: #{residual_block_forward.5} parent=5 // pred_check
      _
    $region10: #{residual_block_forward.5} parent=5 // pred_check_branch
      %209 = sbr.rel (%p206) target = $region12
    $region11: #{residual_block_forward.5} parent=5 // pred_region
      %s210 = ssub.s32 %s13, 1
      // Predicated region
      $region13: #{residual_block_forward.5} parent=11 // pred_check
        %p211 = pneg %p60
      $region14: #{residual_block_forward.5} parent=11 // pred_check_branch
        %213 = sbr.rel (%p211) target = $region16
      $region15: #{residual_block_forward.5} parent=11 // pred_region
        _
      $region16: #{residual_block_forward.5} parent=11 // pred_fallthru
        _
      // Predicated region
      $region17: #{residual_block_forward.5} parent=11 // pred_check
        %p214 = pneg %p81
      $region18: #{residual_block_forward.5} parent=11 // pred_check_branch
        %216 = sbr.rel (%p214) target = $region20
      $region19: #{residual_block_forward.5} parent=11 // pred_region
        _
      $region20: #{residual_block_forward.5} parent=11 // pred_fallthru
        _
      // Predicated region
      $region21: #{residual_block_forward.5} parent=11 // pred_check
        %p217 = pneg %p102
      $region22: #{residual_block_forward.5} parent=11 // pred_check_branch
        %219 = sbr.rel (%p217) target = $region24
      $region23: #{residual_block_forward.5} parent=11 // pred_region
        _
      $region24: #{residual_block_forward.5} parent=11 // pred_fallthru
        _
      // Predicated region
      $region25: #{residual_block_forward.5} parent=11 // pred_check
        %p220 = pneg %p149
      $region26: #{residual_block_forward.5} parent=11 // pred_check_branch
        %222 = sbr.rel (%p220) target = $region28
      $region27: #{residual_block_forward.5} parent=11 // pred_region
        _
      $region28: #{residual_block_forward.5} parent=11 // pred_fallthru
        _
      // Predicated region
      $region29: #{residual_block_forward.5} parent=11 // pred_check
        %p223 = pneg %p170
      $region30: #{residual_block_forward.5} parent=11 // pred_check_branch
        %225 = sbr.rel (%p223) target = $region32
      $region31: #{residual_block_forward.5} parent=11 // pred_region
        _
      $region32: #{residual_block_forward.5} parent=11 // pred_fallthru
        _
    $region12: #{residual_block_forward.5} parent=5 // pred_fallthru
      _
    %p226 = scmp.lt.s32.totalorder %s13, 2
    // Predicated region
    $region33: #{residual_block_forward.5} parent=5 // pred_check
      %p227 = pneg %p226
    $region34: #{residual_block_forward.5} parent=5 // pred_check_branch
      %229 = sbr.rel (%p227) target = $region36
    $region35: #{residual_block_forward.5} parent=5 // pred_region
      // Predicated region
      $region37: #{residual_block_forward.5} parent=35 // pred_check
        %p230 = pneg %p33
      $region38: #{residual_block_forward.5} parent=35 // pred_check_branch
        %232 = sbr.rel (%p230) target = $region40
      $region39: #{residual_block_forward.5} parent=35 // pred_region
        %p233 = scmp.lt.s32.totalorder %s13, 1
        %s234 = scalar_select %p233, %s13, 1
        %s235 = smul.addr %s234, 2
        %s236 = smul.addr %s235, 8
        %s237 = scalar_lea.vmem %s0, %s236
      $region40: #{residual_block_forward.5} parent=35 // pred_fallthru
        _
      // Predicated region
      $region41: #{residual_block_forward.5} parent=35 // pred_check
        %p238 = pneg %p122
      $region42: #{residual_block_forward.5} parent=35 // pred_check_branch
        %240 = sbr.rel (%p238) target = $region44
      $region43: #{residual_block_forward.5} parent=35 // pred_region
        %p241 = scmp.lt.s32.totalorder %s13, 1
        %s242 = scalar_select %p241, %s13, 1
        %s243 = smul.addr %s242, 2
        %s244 = smul.addr %s243, 8
        %s245 = scalar_lea.vmem %s4, %s244
      $region44: #{residual_block_forward.5} parent=35 // pred_fallthru
        _
    $region36: #{residual_block_forward.5} parent=5 // pred_fallthru
      _
    %p246 = scmp.le.s32.totalorder 1, %s13
    %p247 = scmp.lt.s32.totalorder %s13, 3
    %p248 = pnand %p246, %p247
    %p249 = pneg %p248
    // Predicated region
    $region45: #{residual_block_forward.5} parent=5 // pred_check
      _
    $region46: #{residual_block_forward.5} parent=5 // pred_check_branch
      %251 = sbr.rel (%p248) target = $region48
    $region47: #{residual_block_forward.5} parent=5 // pred_region
      %s252 = ssub.s32 %s13, 1
      %p253 = scmp.lt.s32.totalorder %s18, 1
      %s254 = scalar_select %p253, %s18, 1
      %s255 = smul.addr %s254, 2
      %s256 = smul.addr %s255, 8
      %s257 = scalar_lea.vmem %s0, %s256
      %p258 = pneg %p39
      %p259 = pneg %p36
      %p260 = pneg %p60
      %p261 = pneg %p57
      %p262 = pneg %p81
      %p263 = pneg %p78
      %p264 = pneg %p102
      %p265 = pneg %p99
      %p266 = scmp.lt.s32.totalorder %s18, 1
      %s267 = scalar_select %p266, %s18, 1
      %s268 = smul.addr %s267, 2
      %s269 = smul.addr %s268, 8
      %s270 = scalar_lea.vmem %s4, %s269
      %p271 = pneg %p128
      %p272 = pneg %p125
      %p273 = pneg %p149
      %p274 = pneg %p146
      %p275 = pneg %p170
      %p276 = pneg %p167
      %p277 = pneg %p196
      %p278 = pneg %p193
      %p279 = scmp.lt.s32.totalorder %s18, 1
      %s280 = scalar_select %p279, %s18, 1
      %s281 = smul.addr %s280, 2
      %s282 = smul.addr %s281, 8
      %s283 = scalar_lea.vmem %s7, %s282
      %p284 = scmp.lt.s32.totalorder %s18, 1
      %s285 = scalar_select %p284, %s18, 1
      %s286 = smul.addr %s285, 2
      %s287 = smul.addr %s286, 8
      %s288 = scalar_lea.vmem %s0, %s287
      %p289 = scmp.lt.s32.totalorder %s18, 1
      %s290 = scalar_select %p289, %s18, 1
      %s291 = smul.addr %s290, 2
      %s292 = smul.addr %s291, 8
      %s293 = scalar_lea.vmem %s4, %s292
      %p294 = scmp.lt.s32.totalorder %s18, 1
      %s295 = scalar_select %p294, %s18, 1
      %s296 = smul.addr %s295, 2
      %s297 = smul.addr %s296, 8
      %s298 = scalar_lea.vmem %s7, %s297
      %v299 = vld [vmem:[%s288] sm:$0xff]
      %v300 = vld [vmem:[%s288 + $0x8] sm:$0xff]
      %v301 = vld [vmem:[%s1] sm:$0x1]
      %v303 = vlaneseq
      %v304 = vshrl.u32 %v303, 7
      %v305 = vsub.s32 0, %v304
      %v306 = vrot.slane %v301, %v305
      %v308 = vmul.f32 %v299, %v306
      %v309 = vmul.f32 %v300, %v306
      %v310 = vld [vmem:[%s2] sm:$0x1]
      %v312 = vlaneseq
      %v313 = vshrl.u32 %v312, 7
      %v314 = vsub.s32 0, %v313
      %v315 = vrot.slane %v310, %v314
      %v317 = vadd.f32 %v308, %v315
      %v318 = vadd.f32 %v309, %v315
      %vm319 = vcmp.ge.f32.partialorder %v317, 0.0
      %vm320 = vcmp.ge.f32.partialorder %v318, 0.0
      %v321 = vld [vmem:[%s3] sm:$0x1]
      %v323 = vlaneseq
      %v324 = vshrl.u32 %v323, 7
      %v325 = vsub.s32 0, %v324
      %v326 = vrot.slane %v321, %v325
      %v328 = vmul.f32 %v326, %v317
      %v329 = vmul.f32 %v326, %v318
      %v330 = vsel %vm319, %v317, %v328
      %v331 = vsel %vm320, %v318, %v329
      %v332 = vld [vmem:[%s293] sm:$0xff]
      %v333 = vld [vmem:[%s293 + $0x8] sm:$0xff]
      %v334 = vld [vmem:[%s5] sm:$0xff]
      %v335 = vld [vmem:[%s5 + $0x8] sm:$0xff]
      %v336 = vld [vmem:[%s5 + $0x10] sm:$0xff]
      %v337 = vld [vmem:[%s5 + $0x18] sm:$0xff]
      %v338 = vld [vmem:[%s5 + $0x20] sm:$0xff]
      %v339 = vld [vmem:[%s5 + $0x28] sm:$0xff]
      %v340 = vld [vmem:[%s5 + $0x30] sm:$0xff]
      %v341 = vld [vmem:[%s5 + $0x38] sm:$0xff]
      %vm342 = vcmask 523264
      %v344 = vsel %vm342, %v332, 0
      %v347 = vsel %vm342, %v333, 0
      %349 = vmatprep.subr.mxu0 0.0
      %350 = vmatpush1.msra.mxu0 %v334
      %351 = vmatprep.subr.mxu0 0.0
      %352 = vmatpush1.msra.mxu0 %v335
      %353 = vmatprep.subr.mxu0 0.0
      %354 = vmatpush1.msra.mxu0 %v336
      %355 = vmatprep.subr.mxu0 0.0
      %356 = vmatpush1.msra.mxu0 %v337
      %357 = vmatprep.subr.mxu0 0.0
      %358 = vmatpush1.msra.mxu0 %v338
      %359 = vmatprep.subr.mxu0 0.0
      %360 = vmatpush1.msra.mxu0 %v339
      %361 = vmatprep.subr.mxu0 0.0
      %362 = vmatpush1.msra.mxu0 %v340
      %363 = vmatprep.subr.mxu0 0.0
      %364 = vmatpush1.msra.mxu0 %v341
      %365 = vmatprep.subr.mxu0 0.0
      %366 = vmatpush1.msra.mxu0 0.0
      %367 = vmatprep.subr.mxu0 0.0
      %368 = vmatpush1.msra.mxu0 0.0
      %369 = vmatprep.subr.mxu0 0.0
      %370 = vmatpush1.msra.mxu0 0.0
      %371 = vmatprep.subr.mxu0 0.0
      %372 = vmatpush1.msra.mxu0 0.0
      %373 = vmatprep.subr.mxu0 0.0
      %374 = vmatpush1.msra.mxu0 0.0
      %375 = vmatprep.subr.mxu0 0.0
      %376 = vmatpush1.msra.mxu0 0.0
      %377 = vmatprep.subr.mxu0 0.0
      %378 = vmatpush1.msra.mxu0 0.0
      %379 = vmatprep.subr.mxu0 0.0
      %380 = vmatpush1.msra.mxu0 0.0
      %381 = vmatprep.subr.mxu0 0.0
      %382 = vmatpush1.msra.mxu0 0.0
      %383 = vmatprep.subr.mxu0 0.0
      %384 = vmatpush1.msra.mxu0 0.0
      %385 = vmatprep.subr.mxu0 0.0
      %386 = vmatpush1.msra.mxu0 0.0
      %387 = vmatprep.subr.mxu0 0.0
      %388 = vmatpush1.msra.mxu0 0.0
      %389 = vmatprep.subr.mxu0 0.0
      %390 = vmatpush1.msra.mxu0 0.0
      %391 = vmatprep.subr.mxu0 0.0
      %392 = vmatpush1.msra.mxu0 0.0
      %393 = vmatprep.subr.mxu0 0.0
      %394 = vmatpush1.msra.mxu0 0.0
      %395 = vmatprep.subr.mxu0 0.0
      %396 = vmatpush1.msra.mxu0 0.0
      %397 = vmatprep.subr.mxu0 0.0
      %398 = vmatpush1.msra.mxu0 0.0
      %399 = vmatprep.subr.mxu0 0.0
      %400 = vmatpush1.msra.mxu0 0.0
      %401 = vmatprep.subr.mxu0 0.0
      %402 = vmatpush1.msra.mxu0 0.0
      %403 = vmatprep.subr.mxu0 0.0
      %404 = vmatpush1.msra.mxu0 0.0
      %405 = vmatprep.subr.mxu0 0.0
      %406 = vmatpush1.msra.mxu0 0.0
      %407 = vmatprep.subr.mxu0 0.0
      %408 = vmatpush1.msra.mxu0 0.0
      %409 = vmatprep.subr.mxu0 0.0
      %410 = vmatpush1.msra.mxu0 0.0
      %411 = vmatprep.subr.mxu0 0.0
      %412 = vmatpush1.msra.mxu0 0.0
      %413 = vmatprep.mubr.f32.mxu0 0.0
      %414 = vmatmul.mubr.f32.gmra.mrb[0].mxu0 %v344
      %v415 = vpop.f32.mrb[0].mxu0
      %v416 = vadd.f32 0.0, %v415
      %v417 = vpop.f32.mrb[0].mxu0
      %418 = vmatprep.mubr.f32.mxu0 0.0
      %419 = vmatmul.mubr.f32.gmra.mrb[0].mxu0 %v347
      %v420 = vpop.f32.mrb[0].mxu0
      %v421 = vadd.f32 0.0, %v420
      %v422 = vpop.f32.mrb[0].mxu0
      %423 = vdwg.mxu0
      %v424 = vadd.f32 %v330, %v416
      %v425 = vadd.f32 %v331, %v421
      %v426 = vld [vmem:[%s6] sm:$0x1]
      %v428 = vlaneseq
      %v429 = vshrl.u32 %v428, 7
      %v430 = vsub.s32 0, %v429
      %v431 = vrot.slane %v426, %v430
      %v433 = vadd.f32 %v424, %v431
      %v434 = vadd.f32 %v425, %v431
      %435 = vst.msk [vmem:[%s298] sm:$0xff] %vm342, %v433
      %436 = vst.msk [vmem:[%s298 + $0x8] sm:$0xff] %vm342, %v434
      %p437 = scmp.lt.s32.totalorder %s18, 1
      %s438 = scalar_select %p437, %s18, 1
      %s439 = smul.addr %s438, 2
      %s440 = smul.addr %s439, 8
      %s441 = scalar_lea.vmem %s7, %s440
      // Predicated region
      $region49: #{residual_block_forward.5} parent=47 // pred_check
        %p442 = pneg %p193
      $region50: #{residual_block_forward.5} parent=47 // pred_check_branch
        %444 = sbr.rel (%p442) target = $region52
      $region51: #{residual_block_forward.5} parent=47 // pred_region
        _
      $region52: #{residual_block_forward.5} parent=47 // pred_fallthru
        _
    $region48: #{residual_block_forward.5} parent=5 // pred_fallthru
      _
    %p445 = scmp.le.s32.totalorder 2, %s13
    // Predicated region
    $region53: #{residual_block_forward.5} parent=5 // pred_check
      %p446 = pneg %p445
    $region54: #{residual_block_forward.5} parent=5 // pred_check_branch
      %448 = sbr.rel (%p446) target = $region56
    $region55: #{residual_block_forward.5} parent=5 // pred_region
      %s449 = ssub.s32 %s13, 2
      // Predicated region
      $region57: #{residual_block_forward.5} parent=55 // pred_check
        %p450 = pneg %p199
      $region58: #{residual_block_forward.5} parent=55 // pred_check_branch
        %452 = sbr.rel (%p450) target = $region60
      $region59: #{residual_block_forward.5} parent=55 // pred_region
        %p453 = scmp.lt.s32.totalorder %s19, 1
        %s454 = scalar_select %p453, %s19, 1
        %s455 = smul.addr %s454, 2
        %s456 = smul.addr %s455, 8
        %s457 = scalar_lea.vmem %s7, %s456
      $region60: #{residual_block_forward.5} parent=55 // pred_fallthru
        _
    $region56: #{residual_block_forward.5} parent=5 // pred_fallthru
      _
  $region6: #{residual_block_forward.5} parent=0 // loop_footer
    %s17 = sadd.s32 1, %s13
  $region7: #{residual_block_forward.5} parent=0 // loop_footer_branch
    %12 = sbr.rel target = $region3
  $region8: #{residual_block_forward.5} parent=0 // loop_exit
    _

// kernel: residual_block_forward.3
$region0: #{residual_block_forward.3}
  #allocation0 [shape = 'u32[]', space=smem, size = 0x4, offset = 0x4, fixed_abs, tag = 'smem constant byte address 0x4 - core index']
  #allocation1 [shape = 'u32[144,128]{1,0:T(1,128)}', space=vmem, size = 0x12000, scoped, tag = 'internal scratch']
  %s0 = inlined_call_operand.vmem [shape: f32[2,16,64], index: 0, kind: input, shape index: {}]
  %s1 = inlined_call_operand.vmem [shape: f32[1,64], index: 1, kind: input, shape index: {}, may-alias: {1,3}]
  %s2 = inlined_call_operand.vmem [shape: f32[1,64], index: 2, kind: input, shape index: {}]
  %s3 = inlined_call_operand.vmem [shape: f32[1,64], index: 3, kind: input, shape index: {}, may-alias: {1,3}]
  %s4 = inlined_call_operand.vmem [shape: f32[3,16,16], index: 4, kind: input, shape index: {}]
  %s5 = inlined_call_operand.vmem [shape: f32[3,64,64], index: 5, kind: input, shape index: {}]
  %s6 = inlined_call_operand.vmem [shape: f32[1,64], index: 6, kind: input, shape index: {}]
  %s7 = inlined_call_operand.vmem [shape: f32[2,16,64], index: 7, kind: output, shape index: {0}]
  %s8 = inlined_call_operand.vmem [shape: f32[2,1,64], index: 8, kind: output, shape index: {1}]
  %s9 = inlined_call_operand.vmem [shape: f32[2,1,64], index: 9, kind: output, shape index: {2}]
  %10 = xla_tuple %s7, %s8, %s9
  %s11 = sld [smem:[#allocation0]]
  $region77: #{residual_block_forward.3} parent=0
    _
  %s13 = ssub.s32 1, %s11
  %s14 = scalar_select 0, %s13, %s11
  loop: start=0, step=1, limit=4
  $region2: #{residual_block_forward.3} parent=0 // loop_pre_header
    _
  $region3: #{residual_block_forward.3} parent=0 // loop_header
    %s16 = sphi 0, %s20
    %p17 = scmp.ge.s32.totalorder %s16, 4
    %s26 = sphi 0, %s28
    %s29 = sphi 0, %s26
    %s30 = sphi 0, %s29
    %s46 = sphi 0, %s30
    %s50 = sphi 0, %s50
    %s52 = sphi 0, %s50
    %s53 = sphi 0, %s52
    %s67 = sphi 0, %s53
    %s71 = sphi 0, %s71
    %s73 = sphi 0, %s71
    %s74 = sphi 0, %s73
    %s88 = sphi 0, %s74
    %s92 = sphi 0, %s92
    %s94 = sphi 0, %s92
    %s95 = sphi 0, %s94
    %s109 = sphi 0, %s95
    %s113 = sphi 0, %s113
    %s115 = sphi 0, %s113
    %s116 = sphi 0, %s115
    %s130 = sphi 0, %s116
    %s134 = sphi 0, %s134
    %s136 = sphi 0, %s134
    %s137 = sphi 0, %s136
    %s151 = sphi 0, %s137
    %s155 = sphi 0, %s155
    %s157 = sphi 0, %s155
    %s158 = sphi 0, %s157
    %s172 = sphi 0, %s158
    %s178 = sphi 0, %s180
    %s181 = sphi 0, %s178
    %s182 = sphi 0, %s181
    %s198 = sphi 0, %s182
    %s204 = sphi 0, %s206
    %s207 = sphi 0, %s204
    %s208 = sphi 0, %s207
    %s224 = sphi 0, %s208
    %s230 = sphi 0, %s232
    %s233 = sphi 0, %s230
    %s234 = sphi 0, %s233
    %s250 = sphi 0, %s234
  $region4: #{residual_block_forward.3} parent=0 // loop_header_branch
    %19 = sbr.rel (%p17) target = $region8
  $region5: #{residual_block_forward.3} parent=0 // loop_body
    %s21 = ssub.s32 %s16, 1
    %s22 = ssub.s32 %s16, 2
    %s23 = sadd.s32 %s16, 1
    %s24 = ssub.s32 %s16, %s23
    %p25 = scmp.eq.s32.totalorder %s24, 0
    %s27 = sadd.s32 %s26, 1
    %s28 = scalar_select %p25, %s26, %s27
    %p31 = pneg %p25
    %p32 = scmp.eq.s32.totalorder %s16, 1
    %p33 = por %p31, %p32
    %p34 = scmp.ne.s32.totalorder %s26, %s29
    %p35 = scmp.eq.s32.totalorder %s16, 0
    %p36 = por %p34, %p35
    %p37 = scmp.ne.s32.totalorder %s26, %s29
    %p38 = scmp.eq.s32.totalorder %s21, 1
    %p39 = por %p37, %p38
    %p40 = scmp.ne.s32.totalorder %s29, %s30
    %p41 = scmp.eq.s32.totalorder %s21, 0
    %p42 = por %p40, %p41
    %p43 = scmp.ne.s32.totalorder %s29, %s30
    %p44 = scmp.eq.s32.totalorder %s22, 1
    %p45 = por %p43, %p44
    %p47 = scmp.ne.s32.totalorder %s30, %s46
    %p48 = scmp.eq.s32.totalorder %s22, 0
    %p49 = por %p47, %p48
    %s51 = sadd.s32 %s50, 1
    %p54 = scmp.eq.s32.totalorder %s16, 1
    %p55 = scmp.ne.s32.totalorder %s50, %s52
    %p56 = scmp.eq.s32.totalorder %s16, 0
    %p57 = por %p55, %p56
    %p58 = scmp.ne.s32.totalorder %s50, %s52
    %p59 = scmp.eq.s32.totalorder %s21, 1
    %p60 = por %p58, %p59
    %p61 = scmp.ne.s32.totalorder %s52, %s53
    %p62 = scmp.eq.s32.totalorder %s21, 0
    %p63 = por %p61, %p62
    %p64 = scmp.ne.s32.totalorder %s52, %s53
    %p65 = scmp.eq.s32.totalorder %s22, 1
    %p66 = por %p64, %p65
    %p68 = scmp.ne.s32.totalorder %s53, %s67
    %p69 = scmp.eq.s32.totalorder %s22, 0
    %p70 = por %p68, %p69
    %s72 = sadd.s32 %s71, 1
    %p75 = scmp.eq.s32.totalorder %s16, 1
    %p76 = scmp.ne.s32.totalorder %s71, %s73
    %p77 = scmp.eq.s32.totalorder %s16, 0
    %p78 = por %p76, %p77
    %p79 = scmp.ne.s32.totalorder %s71, %s73
    %p80 = scmp.eq.s32.totalorder %s21, 1
    %p81 = por %p79, %p80
    %p82 = scmp.ne.s32.totalorder %s73, %s74
    %p83 = scmp.eq.s32.totalorder %s21, 0
    %p84 = por %p82, %p83
    %p85 = scmp.ne.s32.totalorder %s73, %s74
    %p86 = scmp.eq.s32.totalorder %s22, 1
    %p87 = por %p85, %p86
    %p89 = scmp.ne.s32.totalorder %s74, %s88
    %p90 = scmp.eq.s32.totalorder %s22, 0
    %p91 = por %p89, %p90
    %s93 = sadd.s32 %s92, 1
    %p96 = scmp.eq.s32.totalorder %s16, 1
    %p97 = scmp.ne.s32.totalorder %s92, %s94
    %p98 = scmp.eq.s32.totalorder %s16, 0
    %p99 = por %p97, %p98
    %p100 = scmp.ne.s32.totalorder %s92, %s94
    %p101 = scmp.eq.s32.totalorder %s21, 1
    %p102 = por %p100, %p101
    %p103 = scmp.ne.s32.totalorder %s94, %s95
    %p104 = scmp.eq.s32.totalorder %s21, 0
    %p105 = por %p103, %p104
    %p106 = scmp.ne.s32.totalorder %s94, %s95
    %p107 = scmp.eq.s32.totalorder %s22, 1
    %p108 = por %p106, %p107
    %p110 = scmp.ne.s32.totalorder %s95, %s109
    %p111 = scmp.eq.s32.totalorder %s22, 0
    %p112 = por %p110, %p111
    %s114 = sadd.s32 %s113, 1
    %p117 = scmp.eq.s32.totalorder %s16, 1
    %p118 = scmp.ne.s32.totalorder %s113, %s115
    %p119 = scmp.eq.s32.totalorder %s16, 0
    %p120 = por %p118, %p119
    %p121 = scmp.ne.s32.totalorder %s113, %s115
    %p122 = scmp.eq.s32.totalorder %s21, 1
    %p123 = por %p121, %p122
    %p124 = scmp.ne.s32.totalorder %s115, %s116
    %p125 = scmp.eq.s32.totalorder %s21, 0
    %p126 = por %p124, %p125
    %p127 = scmp.ne.s32.totalorder %s115, %s116
    %p128 = scmp.eq.s32.totalorder %s22, 1
    %p129 = por %p127, %p128
    %p131 = scmp.ne.s32.totalorder %s116, %s130
    %p132 = scmp.eq.s32.totalorder %s22, 0
    %p133 = por %p131, %p132
    %s135 = sadd.s32 %s134, 1
    %p138 = scmp.eq.s32.totalorder %s16, 1
    %p139 = scmp.ne.s32.totalorder %s134, %s136
    %p140 = scmp.eq.s32.totalorder %s16, 0
    %p141 = por %p139, %p140
    %p142 = scmp.ne.s32.totalorder %s134, %s136
    %p143 = scmp.eq.s32.totalorder %s21, 1
    %p144 = por %p142, %p143
    %p145 = scmp.ne.s32.totalorder %s136, %s137
    %p146 = scmp.eq.s32.totalorder %s21, 0
    %p147 = por %p145, %p146
    %p148 = scmp.ne.s32.totalorder %s136, %s137
    %p149 = scmp.eq.s32.totalorder %s22, 1
    %p150 = por %p148, %p149
    %p152 = scmp.ne.s32.totalorder %s137, %s151
    %p153 = scmp.eq.s32.totalorder %s22, 0
    %p154 = por %p152, %p153
    %s156 = sadd.s32 %s155, 1
    %p159 = scmp.eq.s32.totalorder %s16, 1
    %p160 = scmp.ne.s32.totalorder %s155, %s157
    %p161 = scmp.eq.s32.totalorder %s16, 0
    %p162 = por %p160, %p161
    %p163 = scmp.ne.s32.totalorder %s155, %s157
    %p164 = scmp.eq.s32.totalorder %s21, 1
    %p165 = por %p163, %p164
    %p166 = scmp.ne.s32.totalorder %s157, %s158
    %p167 = scmp.eq.s32.totalorder %s21, 0
    %p168 = por %p166, %p167
    %p169 = scmp.ne.s32.totalorder %s157, %s158
    %p170 = scmp.eq.s32.totalorder %s22, 1
    %p171 = por %p169, %p170
    %p173 = scmp.ne.s32.totalorder %s158, %s172
    %p174 = scmp.eq.s32.totalorder %s22, 0
    %p175 = por %p173, %p174
    %s176 = ssub.s32 %s16, %s23
    %p177 = scmp.eq.s32.totalorder %s176, 0
    %s179 = sadd.s32 %s178, 1
    %s180 = scalar_select %p177, %s178, %s179
    %p183 = pneg %p177
    %p184 = scmp.eq.s32.totalorder %s16, 1
    %p185 = por %p183, %p184
    %p186 = scmp.ne.s32.totalorder %s178, %s181
    %p187 = scmp.eq.s32.totalorder %s16, 0
    %p188 = por %p186, %p187
    %p189 = scmp.ne.s32.totalorder %s178, %s181
    %p190 = scmp.eq.s32.totalorder %s21, 1
    %p191 = por %p189, %p190
    %p192 = scmp.ne.s32.totalorder %s181, %s182
    %p193 = scmp.eq.s32.totalorder %s21, 0
    %p194 = por %p192, %p193
    %p195 = scmp.ne.s32.totalorder %s181, %s182
    %p196 = scmp.eq.s32.totalorder %s22, 1
    %p197 = por %p195, %p196
    %p199 = scmp.ne.s32.totalorder %s182, %s198
    %p200 = scmp.eq.s32.totalorder %s22, 0
    %p201 = por %p199, %p200
    %s202 = ssub.s32 %s16, %s23
    %p203 = scmp.eq.s32.totalorder %s202, 0
    %s205 = sadd.s32 %s204, 1
    %s206 = scalar_select %p203, %s204, %s205
    %p209 = pneg %p203
    %p210 = scmp.eq.s32.totalorder %s16, 1
    %p211 = por %p209, %p210
    %p212 = scmp.ne.s32.totalorder %s204, %s207
    %p213 = scmp.eq.s32.totalorder %s16, 0
    %p214 = por %p212, %p213
    %p215 = scmp.ne.s32.totalorder %s204, %s207
    %p216 = scmp.eq.s32.totalorder %s21, 1
    %p217 = por %p215, %p216
    %p218 = scmp.ne.s32.totalorder %s207, %s208
    %p219 = scmp.eq.s32.totalorder %s21, 0
    %p220 = por %p218, %p219
    %p221 = scmp.ne.s32.totalorder %s207, %s208
    %p222 = scmp.eq.s32.totalorder %s22, 1
    %p223 = por %p221, %p222
    %p225 = scmp.ne.s32.totalorder %s208, %s224
    %p226 = scmp.eq.s32.totalorder %s22, 0
    %p227 = por %p225, %p226
    %s228 = ssub.s32 %s16, %s23
    %p229 = scmp.eq.s32.totalorder %s228, 0
    %s231 = sadd.s32 %s230, 1
    %s232 = scalar_select %p229, %s230, %s231
    %p235 = pneg %p229
    %p236 = scmp.eq.s32.totalorder %s16, 1
    %p237 = por %p235, %p236
    %p238 = scmp.ne.s32.totalorder %s230, %s233
    %p239 = scmp.eq.s32.totalorder %s16, 0
    %p240 = por %p238, %p239
    %p241 = scmp.ne.s32.totalorder %s230, %s233
    %p242 = scmp.eq.s32.totalorder %s21, 1
    %p243 = por %p241, %p242
    %p244 = scmp.ne.s32.totalorder %s233, %s234
    %p245 = scmp.eq.s32.totalorder %s21, 0
    %p246 = por %p244, %p245
    %p247 = scmp.ne.s32.totalorder %s233, %s234
    %p248 = scmp.eq.s32.totalorder %s22, 1
    %p249 = por %p247, %p248
    %p251 = scmp.ne.s32.totalorder %s234, %s250
    %p252 = scmp.eq.s32.totalorder %s22, 0
    %p253 = por %p251, %p252
    %p254 = scmp.le.s32.totalorder 1, %s16
    %p255 = scmp.lt.s32.totalorder %s16, 3
    %p256 = pnand %p254, %p255
    %p257 = pneg %p256
    // Predicated region
    $region9: #{residual_block_forward.3} parent=5 // pred_check
      _
    $region10: #{residual_block_forward.3} parent=5 // pred_check_branch
      %259 = sbr.rel (%p256) target = $region12
    $region11: #{residual_block_forward.3} parent=5 // pred_region
      %s260 = ssub.s32 %s16, 1
      // Predicated region
      $region13: #{residual_block_forward.3} parent=11 // pred_check
        %p261 = pneg %p63
      $region14: #{residual_block_forward.3} parent=11 // pred_check_branch
        %263 = sbr.rel (%p261) target = $region16
      $region15: #{residual_block_forward.3} parent=11 // pred_region
        _
      $region16: #{residual_block_forward.3} parent=11 // pred_fallthru
        _
      // Predicated region
      $region17: #{residual_block_forward.3} parent=11 // pred_check
        %p264 = pneg %p84
      $region18: #{residual_block_forward.3} parent=11 // pred_check_branch
        %266 = sbr.rel (%p264) target = $region20
      $region19: #{residual_block_forward.3} parent=11 // pred_region
        _
      $region20: #{residual_block_forward.3} parent=11 // pred_fallthru
        _
      // Predicated region
      $region21: #{residual_block_forward.3} parent=11 // pred_check
        %p267 = pneg %p105
      $region22: #{residual_block_forward.3} parent=11 // pred_check_branch
        %269 = sbr.rel (%p267) target = $region24
      $region23: #{residual_block_forward.3} parent=11 // pred_region
        _
      $region24: #{residual_block_forward.3} parent=11 // pred_fallthru
        _
      // Predicated region
      $region25: #{residual_block_forward.3} parent=11 // pred_check
        %p270 = pneg %p126
      $region26: #{residual_block_forward.3} parent=11 // pred_check_branch
        %272 = sbr.rel (%p270) target = $region28
      $region27: #{residual_block_forward.3} parent=11 // pred_region
        _
      $region28: #{residual_block_forward.3} parent=11 // pred_fallthru
        _
      // Predicated region
      $region29: #{residual_block_forward.3} parent=11 // pred_check
        %p273 = pneg %p147
      $region30: #{residual_block_forward.3} parent=11 // pred_check_branch
        %275 = sbr.rel (%p273) target = $region32
      $region31: #{residual_block_forward.3} parent=11 // pred_region
        _
      $region32: #{residual_block_forward.3} parent=11 // pred_fallthru
        _
      // Predicated region
      $region33: #{residual_block_forward.3} parent=11 // pred_check
        %p276 = pneg %p168
      $region34: #{residual_block_forward.3} parent=11 // pred_check_branch
        %278 = sbr.rel (%p276) target = $region36
      $region35: #{residual_block_forward.3} parent=11 // pred_region
        _
      $region36: #{residual_block_forward.3} parent=11 // pred_fallthru
        _
    $region12: #{residual_block_forward.3} parent=5 // pred_fallthru
      _
    %p279 = scmp.lt.s32.totalorder %s16, 2
    // Predicated region
    $region37: #{residual_block_forward.3} parent=5 // pred_check
      %p280 = pneg %p279
    $region38: #{residual_block_forward.3} parent=5 // pred_check_branch
      %282 = sbr.rel (%p280) target = $region40
    $region39: #{residual_block_forward.3} parent=5 // pred_region
      // Predicated region
      $region41: #{residual_block_forward.3} parent=39 // pred_check
        %p283 = pneg %p36
      $region42: #{residual_block_forward.3} parent=39 // pred_check_branch
        %285 = sbr.rel (%p283) target = $region44
      $region43: #{residual_block_forward.3} parent=39 // pred_region
        %p286 = scmp.lt.s32.totalorder %s16, 1
        %s287 = scalar_select %p286, %s16, 1
        %s288 = smul.addr %s287, 2
        %s289 = smul.addr %s288, 8
        %s290 = scalar_lea.vmem %s0, %s289
      $region44: #{residual_block_forward.3} parent=39 // pred_fallthru
        _
    $region40: #{residual_block_forward.3} parent=5 // pred_fallthru
      _
    %p291 = scmp.le.s32.totalorder 1, %s16
    %p292 = scmp.lt.s32.totalorder %s16, 3
    %p293 = pnand %p291, %p292
    %p294 = pneg %p293
    // Predicated region
    $region45: #{residual_block_forward.3} parent=5 // pred_check
      _
    $region46: #{residual_block_forward.3} parent=5 // pred_check_branch
      %296 = sbr.rel (%p293) target = $region48
    $region47: #{residual_block_forward.3} parent=5 // pred_region
      %s297 = ssub.s32 %s16, 1
      %p298 = scmp.lt.s32.totalorder %s21, 1
      %s299 = scalar_select %p298, %s21, 1
      %s300 = smul.addr %s299, 2
      %s301 = smul.addr %s300, 8
      %s302 = scalar_lea.vmem %s0, %s301
      %p303 = pneg %p42
      %p304 = pneg %p39
      %p305 = pneg %p63
      %p306 = pneg %p60
      %p307 = pneg %p84
      %p308 = pneg %p81
      %p309 = pneg %p105
      %p310 = pneg %p102
      %p311 = pneg %p126
      %p312 = pneg %p123
      %p313 = pneg %p147
      %p314 = pneg %p144
      %p315 = pneg %p168
      %p316 = pneg %p165
      %p317 = pneg %p194
      %p318 = pneg %p191
      %p319 = scmp.lt.s32.totalorder %s21, 1
      %s320 = scalar_select %p319, %s21, 1
      %s321 = smul.addr %s320, 2
      %s322 = smul.addr %s321, 8
      %s323 = scalar_lea.vmem %s7, %s322
      %p324 = pneg %p220
      %p325 = pneg %p217
      %p326 = scmp.lt.s32.totalorder %s21, 1
      %s327 = scalar_select %p326, %s21, 1
      %s328 = scalar_lea.vmem %s8, %s327
      %p329 = pneg %p246
      %p330 = pneg %p243
      %p331 = scmp.lt.s32.totalorder %s21, 1
      %s332 = scalar_select %p331, %s21, 1
      %s333 = scalar_lea.vmem %s9, %s332
      %p334 = scmp.lt.s32.totalorder %s21, 1
      %s335 = scalar_select %p334, %s21, 1
      %s336 = smul.addr %s335, 2
      %s337 = smul.addr %s336, 8
      %s338 = scalar_lea.vmem %s0, %s337
      %p339 = scmp.lt.s32.totalorder %s21, 1
      %s340 = scalar_select %p339, %s21, 1
      %s341 = smul.addr %s340, 2
      %s342 = smul.addr %s341, 8
      %s343 = scalar_lea.vmem %s7, %s342
      %p344 = scmp.lt.s32.totalorder %s21, 1
      %s345 = scalar_select %p344, %s21, 1
      %s346 = scalar_lea.vmem %s8, %s345
      %p347 = scmp.lt.s32.totalorder %s21, 1
      %s348 = scalar_select %p347, %s21, 1
      %s349 = scalar_lea.vmem %s9, %s348
      %v350 = vld [vmem:[%s338] sm:$0xff]
      %v351 = vld [vmem:[%s338 + $0x8] sm:$0xff]
      %v352 = vld [vmem:[%s1] sm:$0x1]
      %v354 = vlaneseq
      %v355 = vshrl.u32 %v354, 7
      %v356 = vsub.s32 0, %v355
      %v357 = vrot.slane %v352, %v356
      %v359 = vmul.f32 %v350, %v357
      %v360 = vmul.f32 %v351, %v357
      %v361 = vld [vmem:[%s2] sm:$0x1]
      %v363 = vlaneseq
      %v364 = vshrl.u32 %v363, 7
      %v365 = vsub.s32 0, %v364
      %v366 = vrot.slane %v361, %v365
      %v368 = vadd.f32 %v359, %v366
      %v369 = vadd.f32 %v360, %v366
      %vm370 = vcmp.ge.f32.partialorder %v368, 0.0
      %vm371 = vcmp.ge.f32.partialorder %v369, 0.0
      %v372 = vld [vmem:[%s3] sm:$0x1]
      %v374 = vlaneseq
      %v375 = vshrl.u32 %v374, 7
      %v376 = vsub.s32 0, %v375
      %v377 = vrot.slane %v372, %v376
      %v379 = vmul.f32 %v377, %v368
      %v380 = vmul.f32 %v377, %v369
      %v381 = vsel %vm370, %v368, %v379
      %v382 = vsel %vm371, %v369, %v380
      %s383 = scalar_lea.vmem %s5, 64
      %v384 = vld [vmem:[%s383] sm:$0xff]
      %v385 = vld [vmem:[%s383 + $0x8] sm:$0xff]
      %v386 = vld [vmem:[%s383 + $0x10] sm:$0xff]
      %v387 = vld [vmem:[%s383 + $0x18] sm:$0xff]
      %v388 = vld [vmem:[%s383 + $0x20] sm:$0xff]
      %v389 = vld [vmem:[%s383 + $0x28] sm:$0xff]
      %v390 = vld [vmem:[%s383 + $0x30] sm:$0xff]
      %v391 = vld [vmem:[%s383 + $0x38] sm:$0xff]
      %v392 = vld [vmem:[%s4] sm:$0xff]
      %v393 = vld [vmem:[%s4 + $0x8] sm:$0xff]
      %vm394 = vcmask 130048
      %v396 = vsel %vm394, %v392, 0
      %v399 = vsel %vm394, %v393, 0
      %401 = vmatprep.subr.mxu0 0.0
      %402 = vmatpush1.msra.mxu0 %v381
      %403 = vmatprep.subr.mxu0 0.0
      %404 = vmatpush1.msra.mxu0 %v382
      %405 = vmatprep.subr.mxu0 0.0
      %406 = vmatpush1.msra.mxu0 0.0
      %407 = vmatprep.subr.mxu0 0.0
      %408 = vmatpush1.msra.mxu0 0.0
      %409 = vmatprep.subr.mxu0 0.0
      %410 = vmatpush1.msra.mxu0 0.0
      %411 = vmatprep.subr.mxu0 0.0
      %412 = vmatpush1.msra.mxu0 0.0
      %413 = vmatprep.subr.mxu0 0.0
      %414 = vmatpush1.msra.mxu0 0.0
      %415 = vmatprep.subr.mxu0 0.0
      %416 = vmatpush1.msra.mxu0 0.0
      %417 = vmatprep.subr.mxu0 0.0
      %418 = vmatpush1.msra.mxu0 0.0
      %419 = vmatprep.subr.mxu0 0.0
      %420 = vmatpush1.msra.mxu0 0.0
      %421 = vmatprep.subr.mxu0 0.0
      %422 = vmatpush1.msra.mxu0 0.0
      %423 = vmatprep.subr.mxu0 0.0
      %424 = vmatpush1.msra.mxu0 0.0
      %425 = vmatprep.subr.mxu0 0.0
      %426 = vmatpush1.msra.mxu0 0.0
      %427 = vmatprep.subr.mxu0 0.0
      %428 = vmatpush1.msra.mxu0 0.0
      %429 = vmatprep.subr.mxu0 0.0
      %430 = vmatpush1.msra.mxu0 0.0
      %431 = vmatprep.subr.mxu0 0.0
      %432 = vmatpush1.msra.mxu0 0.0
      %433 = vmatprep.subr.mxu0 0.0
      %434 = vmatpush1.msra.mxu0 0.0
      %435 = vmatprep.subr.mxu0 0.0
      %436 = vmatpush1.msra.mxu0 0.0
      %437 = vmatprep.subr.mxu0 0.0
      %438 = vmatpush1.msra.mxu0 0.0
      %439 = vmatprep.subr.mxu0 0.0
      %440 = vmatpush1.msra.mxu0 0.0
      %441 = vmatprep.subr.mxu0 0.0
      %442 = vmatpush1.msra.mxu0 0.0
      %443 = vmatprep.subr.mxu0 0.0
      %444 = vmatpush1.msra.mxu0 0.0
      %445 = vmatprep.subr.mxu0 0.0
      %446 = vmatpush1.msra.mxu0 0.0
      %447 = vmatprep.subr.mxu0 0.0
      %448 = vmatpush1.msra.mxu0 0.0
      %449 = vmatprep.subr.mxu0 0.0
      %450 = vmatpush1.msra.mxu0 0.0
      %451 = vmatprep.subr.mxu0 0.0
      %452 = vmatpush1.msra.mxu0 0.0
      %453 = vmatprep.subr.mxu0 0.0
      %454 = vmatpush1.msra.mxu0 0.0
      %455 = vmatprep.subr.mxu0 0.0
      %456 = vmatpush1.msra.mxu0 0.0
      %457 = vmatprep.subr.mxu0 0.0
      %458 = vmatpush1.msra.mxu0 0.0
      %459 = vmatprep.subr.mxu0 0.0
      %460 = vmatpush1.msra.mxu0 0.0
      %461 = vmatprep.subr.mxu0 0.0
      %462 = vmatpush1.msra.mxu0 0.0
      %463 = vmatprep.subr.mxu0 0.0
      %464 = vmatpush1.msra.mxu0 0.0
      %465 = vmatprep.mubr.f32.mxu0 0.0
      %466 = vmatmul.mubr.f32.gmra.mrb[0].mxu0 %v396
      %v467 = vpop.f32.mrb[0].mxu0
      %v468 = vadd.f32 0.0, %v467
      %v469 = vpop.f32.mrb[0].mxu0
      %470 = vmatprep.mubr.f32.mxu0 0.0
      %471 = vmatmul.mubr.f32.gmra.mrb[0].mxu0 %v399
      %v472 = vpop.f32.mrb[0].mxu0
      %v473 = vadd.f32 0.0, %v472
      %v474 = vpop.f32.mrb[0].mxu0
      %475 = vdwg.mxu0
      %v476 = vld [vmem:[%s5] sm:$0xff]
      %v477 = vld [vmem:[%s5 + $0x8] sm:$0xff]
      %v478 = vld [vmem:[%s5 + $0x10] sm:$0xff]
      %v479 = vld [vmem:[%s5 + $0x18] sm:$0xff]
      %v480 = vld [vmem:[%s5 + $0x20] sm:$0xff]
      %v481 = vld [vmem:[%s5 + $0x28] sm:$0xff]
      %v482 = vld [vmem:[%s5 + $0x30] sm:$0xff]
      %v483 = vld [vmem:[%s5 + $0x38] sm:$0xff]
      %vm484 = vcmask 523264
      %v486 = vsel %vm484, %v468, 0
      %v489 = vsel %vm484, %v473, 0
      %491 = vmatprep.subr.mxu0 0.0
      %492 = vmatpush1.msra.mxu0 %v476
      %493 = vmatprep.subr.mxu0 0.0
      %494 = vmatpush1.msra.mxu0 %v477
      %495 = vmatprep.subr.mxu0 0.0
      %496 = vmatpush1.msra.mxu0 %v478
      %497 = vmatprep.subr.mxu0 0.0
      %498 = vmatpush1.msra.mxu0 %v479
      %499 = vmatprep.subr.mxu0 0.0
      %500 = vmatpush1.msra.mxu0 %v480
      %501 = vmatprep.subr.mxu0 0.0
      %502 = vmatpush1.msra.mxu0 %v481
      %503 = vmatprep.subr.mxu0 0.0
      %504 = vmatpush1.msra.mxu0 %v482
      %505 = vmatprep.subr.mxu0 0.0
      %506 = vmatpush1.msra.mxu0 %v483
      %507 = vmatprep.subr.mxu0 0.0
      %508 = vmatpush1.msra.mxu0 0.0
      %509 = vmatprep.subr.mxu0 0.0
      %510 = vmatpush1.msra.mxu0 0.0
      %511 = vmatprep.subr.mxu0 0.0
      %512 = vmatpush1.msra.mxu0 0.0
      %513 = vmatprep.subr.mxu0 0.0
      %514 = vmatpush1.msra.mxu0 0.0
      %515 = vmatprep.subr.mxu0 0.0
      %516 = vmatpush1.msra.mxu0 0.0
      %517 = vmatprep.subr.mxu0 0.0
      %518 = vmatpush1.msra.mxu0 0.0
      %519 = vmatprep.subr.mxu0 0.0
      %520 = vmatpush1.msra.mxu0 0.0
      %521 = vmatprep.subr.mxu0 0.0
      %522 = vmatpush1.msra.mxu0 0.0
      %523 = vmatprep.subr.mxu0 0.0
      %524 = vmatpush1.msra.mxu0 0.0
      %525 = vmatprep.subr.mxu0 0.0
      %526 = vmatpush1.msra.mxu0 0.0
      %527 = vmatprep.subr.mxu0 0.0
      %528 = vmatpush1.msra.mxu0 0.0
      %529 = vmatprep.subr.mxu0 0.0
      %530 = vmatpush1.msra.mxu0 0.0
      %531 = vmatprep.subr.mxu0 0.0
      %532 = vmatpush1.msra.mxu0 0.0
      %533 = vmatprep.subr.mxu0 0.0
      %534 = vmatpush1.msra.mxu0 0.0
      %535 = vmatprep.subr.mxu0 0.0
      %536 = vmatpush1.msra.mxu0 0.0
      %537 = vmatprep.subr.mxu0 0.0
      %538 = vmatpush1.msra.mxu0 0.0
      %539 = vmatprep.subr.mxu0 0.0
      %540 = vmatpush1.msra.mxu0 0.0
      %541 = vmatprep.subr.mxu0 0.0
      %542 = vmatpush1.msra.mxu0 0.0
      %543 = vmatprep.subr.mxu0 0.0
      %544 = vmatpush1.msra.mxu0 0.0
      %545 = vmatprep.subr.mxu0 0.0
      %546 = vmatpush1.msra.mxu0 0.0
      %547 = vmatprep.subr.mxu0 0.0
      %548 = vmatpush1.msra.mxu0 0.0
      %549 = vmatprep.subr.mxu0 0.0
      %550 = vmatpush1.msra.mxu0 0.0
      %551 = vmatprep.subr.mxu0 0.0
      %552 = vmatpush1.msra.mxu0 0.0
      %553 = vmatprep.subr.mxu0 0.0
      %554 = vmatpush1.msra.mxu0 0.0
      %555 = vmatprep.mubr.f32.mxu0 0.0
      %556 = vmatmul.mubr.f32.gmra.mrb[0].mxu0 %v486
      %v557 = vpop.f32.mrb[0].mxu0
      %v558 = vadd.f32 0.0, %v557
      %v559 = vpop.f32.mrb[0].mxu0
      %560 = vmatprep.mubr.f32.mxu0 0.0
      %561 = vmatmul.mubr.f32.gmra.mrb[0].mxu0 %v489
      %v562 = vpop.f32.mrb[0].mxu0
      %v563 = vadd.f32 0.0, %v562
      %v564 = vpop.f32.mrb[0].mxu0
      %565 = vdwg.mxu0
      %v567 = vsel %vm484, %v381, 0
      %v570 = vsel %vm484, %v382, 0
      %572 = vmatprep.subr.mxu0 0.0
      %573 = vmatpush1.msra.mxu0 %v384
      %574 = vmatprep.subr.mxu0 0.0
      %575 = vmatpush1.msra.mxu0 %v385
      %576 = vmatprep.subr.mxu0 0.0
      %577 = vmatpush1.msra.mxu0 %v386
      %578 = vmatprep.subr.mxu0 0.0
      %579 = vmatpush1.msra.mxu0 %v387
      %580 = vmatprep.subr.mxu0 0.0
      %581 = vmatpush1.msra.mxu0 %v388
      %582 = vmatprep.subr.mxu0 0.0
      %583 = vmatpush1.msra.mxu0 %v389
      %584 = vmatprep.subr.mxu0 0.0
      %585 = vmatpush1.msra.mxu0 %v390
      %586 = vmatprep.subr.mxu0 0.0
      %587 = vmatpush1.msra.mxu0 %v391
      %588 = vmatprep.subr.mxu0 0.0
      %589 = vmatpush1.msra.mxu0 0.0
      %590 = vmatprep.subr.mxu0 0.0
      %591 = vmatpush1.msra.mxu0 0.0
      %592 = vmatprep.subr.mxu0 0.0
      %593 = vmatpush1.msra.mxu0 0.0
      %594 = vmatprep.subr.mxu0 0.0
      %595 = vmatpush1.msra.mxu0 0.0
      %596 = vmatprep.subr.mxu0 0.0
      %597 = vmatpush1.msra.mxu0 0.0
      %598 = vmatprep.subr.mxu0 0.0
      %599 = vmatpush1.msra.mxu0 0.0
      %600 = vmatprep.subr.mxu0 0.0
      %601 = vmatpush1.msra.mxu0 0.0
      %602 = vmatprep.subr.mxu0 0.0
      %603 = vmatpush1.msra.mxu0 0.0
      %604 = vmatprep.subr.mxu0 0.0
      %605 = vmatpush1.msra.mxu0 0.0
      %606 = vmatprep.subr.mxu0 0.0
      %607 = vmatpush1.msra.mxu0 0.0
      %608 = vmatprep.subr.mxu0 0.0
      %609 = vmatpush1.msra.mxu0 0.0
      %610 = vmatprep.subr.mxu0 0.0
      %611 = vmatpush1.msra.mxu0 0.0
      %612 = vmatprep.subr.mxu0 0.0
      %613 = vmatpush1.msra.mxu0 0.0
      %614 = vmatprep.subr.mxu0 0.0
      %615 = vmatpush1.msra.mxu0 0.0
      %616 = vmatprep.subr.mxu0 0.0
      %617 = vmatpush1.msra.mxu0 0.0
      %618 = vmatprep.subr.mxu0 0.0
      %619 = vmatpush1.msra.mxu0 0.0
      %620 = vmatprep.subr.mxu0 0.0
      %621 = vmatpush1.msra.mxu0 0.0
      %622 = vmatprep.subr.mxu0 0.0
      %623 = vmatpush1.msra.mxu0 0.0
      %624 = vmatprep.subr.mxu0 0.0
      %625 = vmatpush1.msra.mxu0 0.0
      %626 = vmatprep.subr.mxu0 0.0
      %627 = vmatpush1.msra.mxu0 0.0
      %628 = vmatprep.subr.mxu0 0.0
      %629 = vmatpush1.msra.mxu0 0.0
      %630 = vmatprep.subr.mxu0 0.0
      %631 = vmatpush1.msra.mxu0 0.0
      %632 = vmatprep.subr.mxu0 0.0
      %633 = vmatpush1.msra.mxu0 0.0
      %634 = vmatprep.subr.mxu0 0.0
      %635 = vmatpush1.msra.mxu0 0.0
      %636 = vmatprep.mubr.f32.mxu0 0.0
      %637 = vmatmul.mubr.f32.gmra.mrb[0].mxu0 %v567
      %v638 = vpop.f32.mrb[0].mxu0
      %v639 = vadd.f32 %v558, %v638
      %v640 = vpop.f32.mrb[0].mxu0
      %641 = vmatprep.mubr.f32.mxu0 0.0
      %642 = vmatmul.mubr.f32.gmra.mrb[0].mxu0 %v570
      %v643 = vpop.f32.mrb[0].mxu0
      %v644 = vadd.f32 %v563, %v643
      %v645 = vpop.f32.mrb[0].mxu0
      %646 = vdwg.mxu0
      %s647 = scalar_lea.vmem %s4, 32
      %v648 = vld [vmem:[%s647] sm:$0xff]
      %v649 = vld [vmem:[%s647 + $0x8] sm:$0xff]
      %v651 = vsel %vm394, %v648, 0
      %v654 = vsel %vm394, %v649, 0
      %656 = vmatprep.subr.mxu0 0.0
      %657 = vmatpush1.msra.mxu0 %v381
      %658 = vmatprep.subr.mxu0 0.0
      %659 = vmatpush1.msra.mxu0 %v382
      %660 = vmatprep.subr.mxu0 0.0
      %661 = vmatpush1.msra.mxu0 0.0
      %662 = vmatprep.subr.mxu0 0.0
      %663 = vmatpush1.msra.mxu0 0.0
      %664 = vmatprep.subr.mxu0 0.0
      %665 = vmatpush1.msra.mxu0 0.0
      %666 = vmatprep.subr.mxu0 0.0
      %667 = vmatpush1.msra.mxu0 0.0
      %668 = vmatprep.subr.mxu0 0.0
      %669 = vmatpush1.msra.mxu0 0.0
      %670 = vmatprep.subr.mxu0 0.0
      %671 = vmatpush1.msra.mxu0 0.0
      %672 = vmatprep.subr.mxu0 0.0
      %673 = vmatpush1.msra.mxu0 0.0
      %674 = vmatprep.subr.mxu0 0.0
      %675 = vmatpush1.msra.mxu0 0.0
      %676 = vmatprep.subr.mxu0 0.0
      %677 = vmatpush1.msra.mxu0 0.0
      %678 = vmatprep.subr.mxu0 0.0
      %679 = vmatpush1.msra.mxu0 0.0
      %680 = vmatprep.subr.mxu0 0.0
      %681 = vmatpush1.msra.mxu0 0.0
      %682 = vmatprep.subr.mxu0 0.0
      %683 = vmatpush1.msra.mxu0 0.0
      %684 = vmatprep.subr.mxu0 0.0
      %685 = vmatpush1.msra.mxu0 0.0
      %686 = vmatprep.subr.mxu0 0.0
      %687 = vmatpush1.msra.mxu0 0.0
      %688 = vmatprep.subr.mxu0 0.0
      %689 = vmatpush1.msra.mxu0 0.0
      %690 = vmatprep.subr.mxu0 0.0
      %691 = vmatpush1.msra.mxu0 0.0
      %692 = vmatprep.subr.mxu0 0.0
      %693 = vmatpush1.msra.mxu0 0.0
      %694 = vmatprep.subr.mxu0 0.0
      %695 = vmatpush1.msra.mxu0 0.0
      %696 = vmatprep.subr.mxu0 0.0
      %697 = vmatpush1.msra.mxu0 0.0
      %698 = vmatprep.subr.mxu0 0.0
      %699 = vmatpush1.msra.mxu0 0.0
      %700 = vmatprep.subr.mxu0 0.0
      %701 = vmatpush1.msra.mxu0 0.0
      %702 = vmatprep.subr.mxu0 0.0
      %703 = vmatpush1.msra.mxu0 0.0
      %704 = vmatprep.subr.mxu0 0.0
      %705 = vmatpush1.msra.mxu0 0.0
      %706 = vmatprep.subr.mxu0 0.0
      %707 = vmatpush1.msra.mxu0 0.0
      %708 = vmatprep.subr.mxu0 0.0
      %709 = vmatpush1.msra.mxu0 0.0
      %710 = vmatprep.subr.mxu0 0.0
      %711 = vmatpush1.msra.mxu0 0.0
      %712 = vmatprep.subr.mxu0 0.0
      %713 = vmatpush1.msra.mxu0 0.0
      %714 = vmatprep.subr.mxu0 0.0
      %715 = vmatpush1.msra.mxu0 0.0
      %716 = vmatprep.subr.mxu0 0.0
      %717 = vmatpush1.msra.mxu0 0.0
      %718 = vmatprep.subr.mxu0 0.0
      %719 = vmatpush1.msra.mxu0 0.0
      %720 = vmatprep.mubr.f32.mxu0 0.0
      %721 = vmatmul.mubr.f32.gmra.mrb[0].mxu0 %v651
      %v722 = vpop.f32.mrb[0].mxu0
      %v723 = vadd.f32 0.0, %v722
      %v724 = vpop.f32.mrb[0].mxu0
      %725 = vmatprep.mubr.f32.mxu0 0.0
      %726 = vmatmul.mubr.f32.gmra.mrb[0].mxu0 %v654
      %v727 = vpop.f32.mrb[0].mxu0
      %v728 = vadd.f32 0.0, %v727
      %v729 = vpop.f32.mrb[0].mxu0
      %730 = vdwg.mxu0
      %s731 = scalar_lea.vmem %s5, 128
      %v732 = vld [vmem:[%s731] sm:$0xff]
      %v733 = vld [vmem:[%s731 + $0x8] sm:$0xff]
      %v734 = vld [vmem:[%s731 + $0x10] sm:$0xff]
      %v735 = vld [vmem:[%s731 + $0x18] sm:$0xff]
      %v736 = vld [vmem:[%s731 + $0x20] sm:$0xff]
      %v737 = vld [vmem:[%s731 + $0x28] sm:$0xff]
      %v738 = vld [vmem:[%s731 + $0x30] sm:$0xff]
      %v739 = vld [vmem:[%s731 + $0x38] sm:$0xff]
      %v741 = vsel %vm484, %v723, 0
      %v744 = vsel %vm484, %v728, 0
      %746 = vmatprep.subr.mxu0 0.0
      %747 = vmatpush1.msra.mxu0 %v732
      %748 = vmatprep.subr.mxu0 0.0
      %749 = vmatpush1.msra.mxu0 %v733
      %750 = vmatprep.subr.mxu0 0.0
      %751 = vmatpush1.msra.mxu0 %v734
      %752 = vmatprep.subr.mxu0 0.0
      %753 = vmatpush1.msra.mxu0 %v735
      %754 = vmatprep.subr.mxu0 0.0
      %755 = vmatpush1.msra.mxu0 %v736
      %756 = vmatprep.subr.mxu0 0.0
      %757 = vmatpush1.msra.mxu0 %v737
      %758 = vmatprep.subr.mxu0 0.0
      %759 = vmatpush1.msra.mxu0 %v738
      %760 = vmatprep.subr.mxu0 0.0
      %761 = vmatpush1.msra.mxu0 %v739
      %762 = vmatprep.subr.mxu0 0.0
      %763 = vmatpush1.msra.mxu0 0.0
      %764 = vmatprep.subr.mxu0 0.0
      %765 = vmatpush1.msra.mxu0 0.0
      %766 = vmatprep.subr.mxu0 0.0
      %767 = vmatpush1.msra.mxu0 0.0
      %768 = vmatprep.subr.mxu0 0.0
      %769 = vmatpush1.msra.mxu0 0.0
      %770 = vmatprep.subr.mxu0 0.0
      %771 = vmatpush1.msra.mxu0 0.0
      %772 = vmatprep.subr.mxu0 0.0
      %773 = vmatpush1.msra.mxu0 0.0
      %774 = vmatprep.subr.mxu0 0.0
      %775 = vmatpush1.msra.mxu0 0.0
      %776 = vmatprep.subr.mxu0 0.0
      %777 = vmatpush1.msra.mxu0 0.0
      %778 = vmatprep.subr.mxu0 0.0
      %779 = vmatpush1.msra.mxu0 0.0
      %780 = vmatprep.subr.mxu0 0.0
      %781 = vmatpush1.msra.mxu0 0.0
      %782 = vmatprep.subr.mxu0 0.0
      %783 = vmatpush1.msra.mxu0 0.0
      %784 = vmatprep.subr.mxu0 0.0
      %785 = vmatpush1.msra.mxu0 0.0
      %786 = vmatprep.subr.mxu0 0.0
      %787 = vmatpush1.msra.mxu0 0.0
      %788 = vmatprep.subr.mxu0 0.0
      %789 = vmatpush1.msra.mxu0 0.0
      %790 = vmatprep.subr.mxu0 0.0
      %791 = vmatpush1.msra.mxu0 0.0
      %792 = vmatprep.subr.mxu0 0.0
      %793 = vmatpush1.msra.mxu0 0.0
      %794 = vmatprep.subr.mxu0 0.0
      %795 = vmatpush1.msra.mxu0 0.0
      %796 = vmatprep.subr.mxu0 0.0
      %797 = vmatpush1.msra.mxu0 0.0
      %798 = vmatprep.subr.mxu0 0.0
      %799 = vmatpush1.msra.mxu0 0.0
      %800 = vmatprep.subr.mxu0 0.0
      %801 = vmatpush1.msra.mxu0 0.0
      %802 = vmatprep.subr.mxu0 0.0
      %803 = vmatpush1.msra.mxu0 0.0
      %804 = vmatprep.subr.mxu0 0.0
      %805 = vmatpush1.msra.mxu0 0.0
      %806 = vmatprep.subr.mxu0 0.0
      %807 = vmatpush1.msra.mxu0 0.0
      %808 = vmatprep.subr.mxu0 0.0
      %809 = vmatpush1.msra.mxu0 0.0
      %810 = vmatprep.mubr.f32.mxu0 0.0
      %811 = vmatmul.mubr.f32.gmra.mrb[0].mxu0 %v741
      %v812 = vpop.f32.mrb[0].mxu0
      %v813 = vadd.f32 0.0, %v812
      %v814 = vpop.f32.mrb[0].mxu0
      %815 = vmatprep.mubr.f32.mxu0 0.0
      %816 = vmatmul.mubr.f32.gmra.mrb[0].mxu0 %v744
      %v817 = vpop.f32.mrb[0].mxu0
      %v818 = vadd.f32 0.0, %v817
      %v819 = vpop.f32.mrb[0].mxu0
      %820 = vdwg.mxu0
      %v821 = vadd.f32 %v639, %v813
      %v822 = vadd.f32 %v644, %v818
      %v823 = vld [vmem:[%s6] sm:$0x1]
      %v825 = vlaneseq
      %v826 = vshrl.u32 %v825, 7
      %v827 = vsub.s32 0, %v826
      %v828 = vrot.slane %v823, %v827
      %v830 = vadd.f32 %v821, %v828
      %v831 = vadd.f32 %v822, %v828
      %832 = vst.msk [vmem:[%s343] sm:$0xff] %vm484, %v830
      %833 = vst.msk [vmem:[%s343 + $0x8] sm:$0xff] %vm484, %v831
      %v834 = vsel %vm484, %v830, 0.0
      %v835 = vsel %vm484, %v831, 0.0
      %v836 = vadd.f32 %v834, %v835
      %v837 = vrot.slane %v836, 4
      %v838 = vadd.f32 %v836, %v837
      %v839 = vrot.slane %v838, 2
      %v840 = vadd.f32 %v838, %v839
      %v841 = vrot.slane %v840, 1
      %v842 = vadd.f32 %v840, %v841
      %vm843 = vcmask 516096
      %844 = vst.msk [vmem:[%s346] sm:$0x1] %vm843, %v842
      %v845 = vmul.f32 %v830, %v830
      %v846 = vmul.f32 %v831, %v831
      %v847 = vsel %vm484, %v845, 0.0
      %v848 = vsel %vm484, %v846, 0.0
      %v849 = vadd.f32 %v847, %v848
      %v850 = vrot.slane %v849, 4
      %v851 = vadd.f32 %v849, %v850
      %v852 = vrot.slane %v851, 2
      %v853 = vadd.f32 %v851, %v852
      %v854 = vrot.slane %v853, 1
      %v855 = vadd.f32 %v853, %v854
      %856 = vst.msk [vmem:[%s349] sm:$0x1] %vm843, %v855
      %p857 = scmp.lt.s32.totalorder %s21, 1
      %s858 = scalar_select %p857, %s21, 1
      %s859 = smul.addr %s858, 2
      %s860 = smul.addr %s859, 8
      %s861 = scalar_lea.vmem %s7, %s860
      %p862 = scmp.lt.s32.totalorder %s21, 1
      %s863 = scalar_select %p862, %s21, 1
      %s864 = scalar_lea.vmem %s8, %s863
      %p865 = scmp.lt.s32.totalorder %s21, 1
      %s866 = scalar_select %p865, %s21, 1
      %s867 = scalar_lea.vmem %s9, %s866
      // Predicated region
      $region49: #{residual_block_forward.3} parent=47 // pred_check
        %p868 = pneg %p191
      $region50: #{residual_block_forward.3} parent=47 // pred_check_branch
        %870 = sbr.rel (%p868) target = $region52
      $region51: #{residual_block_forward.3} parent=47 // pred_region
        _
      $region52: #{residual_block_forward.3} parent=47 // pred_fallthru
        _
      // Predicated region
      $region53: #{residual_block_forward.3} parent=47 // pred_check
        %p871 = pneg %p217
      $region54: #{residual_block_forward.3} parent=47 // pred_check_branch
        %873 = sbr.rel (%p871) target = $region56
      $region55: #{residual_block_forward.3} parent=47 // pred_region
        _
      $region56: #{residual_block_forward.3} parent=47 // pred_fallthru
        _
      // Predicated region
      $region57: #{residual_block_forward.3} parent=47 // pred_check
        %p874 = pneg %p243
      $region58: #{residual_block_forward.3} parent=47 // pred_check_branch
        %876 = sbr.rel (%p874) target = $region60
      $region59: #{residual_block_forward.3} parent=47 // pred_region
        _
      $region60: #{residual_block_forward.3} parent=47 // pred_fallthru
        _
    $region48: #{residual_block_forward.3} parent=5 // pred_fallthru
      _
    %p877 = scmp.le.s32.totalorder 2, %s16
    // Predicated region
    $region61: #{residual_block_forward.3} parent=5 // pred_check
      %p878 = pneg %p877
    $region62: #{residual_block_forward.3} parent=5 // pred_check_branch
      %880 = sbr.rel (%p878) target = $region64
    $region63: #{residual_block_forward.3} parent=5 // pred_region
      %s881 = ssub.s32 %s16, 2
      // Predicated region
      $region65: #{residual_block_forward.3} parent=63 // pred_check
        %p882 = pneg %p197
      $region66: #{residual_block_forward.3} parent=63 // pred_check_branch
        %884 = sbr.rel (%p882) target = $region68
      $region67: #{residual_block_forward.3} parent=63 // pred_region
        %p885 = scmp.lt.s32.totalorder %s22, 1
        %s886 = scalar_select %p885, %s22, 1
        %s887 = smul.addr %s886, 2
        %s888 = smul.addr %s887, 8
        %s889 = scalar_lea.vmem %s7, %s888
      $region68: #{residual_block_forward.3} parent=63 // pred_fallthru
        _
      // Predicated region
      $region69: #{residual_block_forward.3} parent=63 // pred_check
        %p890 = pneg %p223
      $region70: #{residual_block_forward.3} parent=63 // pred_check_branch
        %892 = sbr.rel (%p890) target = $region72
      $region71: #{residual_block_forward.3} parent=63 // pred_region
        %p893 = scmp.lt.s32.totalorder %s22, 1
        %s894 = scalar_select %p893, %s22, 1
        %s895 = scalar_lea.vmem %s8, %s894
      $region72: #{residual_block_forward.3} parent=63 // pred_fallthru
        _
      // Predicated region
      $region73: #{residual_block_forward.3} parent=63 // pred_check
        %p896 = pneg %p249
      $region74: #{residual_block_forward.3} parent=63 // pred_check_branch
        %898 = sbr.rel (%p896) target = $region76
      $region75: #{residual_block_forward.3} parent=63 // pred_region
        %p899 = scmp.lt.s32.totalorder %s22, 1
        %s900 = scalar_select %p899, %s22, 1
        %s901 = scalar_lea.vmem %s9, %s900
      $region76: #{residual_block_forward.3} parent=63 // pred_fallthru
        _
    $region64: #{residual_block_forward.3} parent=5 // pred_fallthru
      _
  $region6: #{residual_block_forward.3} parent=0 // loop_footer
    %s20 = sadd.s32 1, %s16
  $region7: #{residual_block_forward.3} parent=0 // loop_footer_branch
    %15 = sbr.rel target = $region3
  $region8: #{residual_block_forward.3} parent=0 // loop_exit
    _

</llo_original>
